<compile_context>
chip_gen: v5e
topology: v5e:2x2
jax: 0.10.0
libtpu: 0.0.40
codegen_flags: <defaults>
</compile_context>

<pallas_src>
import functools

import jax
import jax.numpy as jnp
from jax.experimental import pallas as pl
from jax.experimental.pallas import tpu as pltpu


# -----------------------------------------------------------------------------
# In-kernel helpers (f32 math -- v5e has no bf16 VPU/EUP path)
# -----------------------------------------------------------------------------
def _layernorm(x, gamma, beta, eps=1e-5):
    # PyTorch nn.LayerNorm: biased variance, eps=1e-5, over last dim.
    mu = jnp.mean(x, axis=-1, keepdims=True)
    var = jnp.mean((x - mu) ** 2, axis=-1, keepdims=True)
    return (x - mu) * jax.lax.rsqrt(var + eps) * gamma + beta


def _gelu_exact(x):
    # PyTorch nn.GELU() default ('none') = exact erf-based GELU.
    return 0.5 * x * (1.0 + jax.lax.erf(x * 0.7071067811865476))


# -----------------------------------------------------------------------------
# Fused per-(batch-block, layer) kernel
# -----------------------------------------------------------------------------
def transformer_layer_kernel(
    x_ref,                                   # (Bt, N, D)  f32 input (read at l==0)
    ln1g_ref, ln1b_ref,                      # (1, D)      f32
    wqkv_ref,                                # (D, 3*inner) bf16 (scale pre-folded into Q cols)
    wout_ref,                                # (inner, D)   bf16
    bout_ref,                                # (1, D)      f32
    ln2g_ref, ln2b_ref,                      # (1, D)      f32
    w1_ref,                                  # (D, mlp)    bf16
    b1_ref,                                  # (1, mlp)    f32
    w2_ref,                                  # (mlp, D)    bf16
    b2_ref,                                  # (1, D)      f32
    o_ref,                                   # (Bt, N, D)  output
    carry_ref,                               # (Bt*N, D)   f32 VMEM scratch (residual stream)
    attn_ref,                                # (Bt*N, inner) bf16 VMEM scratch (head outputs)
    *, bt, n, heads, dim_head,
):
    layer = pl.program_id(1)
    n_layers = pl.num_programs(1)
    rows = bt * n
    inner = heads * dim_head

    # Load the residual stream into the resident carry at the first layer.
    @pl.when(layer == 0)
    def _():
        carry_ref[...] = x_ref[...].astype(jnp.float32).reshape(rows, -1)

    x = carry_ref[...]                                           # (rows, D) f32

    # ---- PreNorm + multi-head self-attention + residual ----------------------
    xn = _layernorm(x, ln1g_ref[...], ln1b_ref[...])
    qkv = jnp.dot(xn.astype(jnp.bfloat16), wqkv_ref[...],
                  preferred_element_type=jnp.float32)            # (rows, 3*inner)
    qkv = qkv.reshape(bt, n, 3 * inner)                          # per-batch view

    # Static unroll over heads (heads is small here; at 12+ heads use
    # lax.fori_loop / 128-lane head groups to bound live ranges).
    # TODO(synk): lane-align head slices/stores at real sizes (dim_head=64 -> 2-head groups).
    for h in range(heads):
        q = qkv[:, :, h * dim_head:(h + 1) * dim_head].astype(jnp.bfloat16)
        k = qkv[:, :, inner + h * dim_head: inner + (h + 1) * dim_head].astype(jnp.bfloat16)
        v = qkv[:, :, 2 * inner + h * dim_head: 2 * inner + (h + 1) * dim_head].astype(jnp.bfloat16)
        # Batched Q.K^T contracting the last dim of both operands -- no materialized
        # transpose of k. (scale already folded into W_qkv's Q columns.)
        s = jnp.einsum("bnd,bmd->bnm", q, k,
                       preferred_element_type=jnp.float32)       # (bt, n, n)
        s = s - jnp.max(s, axis=-1, keepdims=True)
        e = jnp.exp(s)
        p = e * pl.reciprocal(jnp.sum(e, axis=-1, keepdims=True), approx=True)
        o = jnp.einsum("bnm,bmd->bnd", p.astype(jnp.bfloat16), v,
                       preferred_element_type=jnp.float32)       # (bt, n, dh)
        # Write this head's output (already bf16) at its static column offset.
        attn_ref[:, h * dim_head:(h + 1) * dim_head] = (
            o.reshape(rows, dim_head).astype(jnp.bfloat16))

    y = jnp.dot(attn_ref[...], wout_ref[...],
                preferred_element_type=jnp.float32) + bout_ref[...]
    x = x + y                                                    # residual

    # ---- PreNorm + FeedForward + residual -------------------------------------
    xn2 = _layernorm(x, ln2g_ref[...], ln2b_ref[...])
    h1 = jnp.dot(xn2.astype(jnp.bfloat16), w1_ref[...],
                 preferred_element_type=jnp.float32) + b1_ref[...]
    h1 = _gelu_exact(h1)
    y2 = jnp.dot(h1.astype(jnp.bfloat16), w2_ref[...],
                 preferred_element_type=jnp.float32) + b2_ref[...]
    x = x + y2                                                   # residual

    carry_ref[...] = x

    @pl.when(layer == n_layers - 1)
    def _():
        o_ref[...] = x.reshape(bt, n, -1).astype(o_ref.dtype)


# -----------------------------------------------------------------------------
# Wrapper: one pallas_call for the whole transformer
# -----------------------------------------------------------------------------
def _pick_batch_block(B, N, target_rows=256):
    """Largest divisor bt of B with bt*N <= max(target_rows, N)."""
    best = 1
    for bt in range(1, B + 1):
        if B % bt == 0 and bt * N <= max(target_rows, N):
            best = bt
    return best


def transformer_forward(x, params, *, heads, dim_head, batch_block=None):
    B, N, D = x.shape
    depth = params["w_qkv"].shape[0]
    inner = heads * dim_head
    mlp_dim = params["w1"].shape[-1]

    bt = _pick_batch_block(B, N) if batch_block is None else batch_block
    assert B % bt == 0
    rows = bt * N

    kernel = functools.partial(transformer_layer_kernel,
                               bt=bt, n=N, heads=heads, dim_head=dim_head)

    def wspec(r, c):   # stacked weight: (depth, r, c), depth squeezed
        return pl.BlockSpec((None, r, c), lambda b, l: (l, 0, 0))

    def vspec(c):      # stacked vector param: (depth, 1, c), depth squeezed
        return pl.BlockSpec((None, 1, c), lambda b, l: (l, 0, 0))

    # ---- explicit VMEM budget (double-buffered weights + act blocks + scratch) --
    weight_layer_bytes = (2 * (D * 3 * inner + inner * D + D * mlp_dim + mlp_dim * D)
                          + 4 * (6 * D + mlp_dim))
    act_block_bytes = rows * D * 4
    footprint = (2 * weight_layer_bytes          # double-buffered bf16 layer weights
                 + 2 * 2 * act_block_bytes       # x in + out blocks, double-buffered
                 + rows * D * 4                  # f32 carry scratch
                 + rows * inner * 2)             # bf16 attn scratch
    vmem_limit = int(min(96 << 20, max(32 << 20, 2 * footprint)))

    # ---- advisory cost estimate for the XLA scheduler ---------------------------
    flops_layer = (2 * B * N * D * 3 * inner          # qkv proj
                   + 4 * B * heads * N * N * dim_head  # scores + attn@V
                   + 2 * B * N * inner * D             # out proj
                   + 4 * B * N * D * mlp_dim)          # mlp
    transc_layer = B * heads * N * N + B * N * mlp_dim
    cost = pl.CostEstimate(
        flops=int(depth * flops_layer),
        transcendentals=int(depth * transc_layer),
        bytes_accessed=int(depth * (B // bt) * weight_layer_bytes + 2 * B * N * D * 4),
    )

    return pl.pallas_call(
        kernel,
        out_shape=jax.ShapeDtypeStruct((B, N, D), x.dtype),
        grid=(B // bt, depth),
        in_specs=[
            pl.BlockSpec((bt, N, D), lambda b, l: (b, 0, 0)),    # x
            vspec(D), vspec(D),                                  # ln1 gamma / beta
            wspec(D, 3 * inner),                                 # W_qkv (bf16, Q cols pre-scaled)
            wspec(inner, D),                                     # W_out (bf16)
            vspec(D),                                            # b_out
            vspec(D), vspec(D),                                  # ln2 gamma / beta
            wspec(D, mlp_dim),                                   # W1 (bf16)
            vspec(mlp_dim),                                      # b1
            wspec(mlp_dim, D),                                   # W2 (bf16)
            vspec(D),                                            # b2
        ],
        out_specs=pl.BlockSpec((bt, N, D), lambda b, l: (b, 0, 0)),
        scratch_shapes=[
            pltpu.VMEM((rows, D), jnp.float32),        # residual-stream carry
            pltpu.VMEM((rows, inner), jnp.bfloat16),   # per-head attention outputs
        ],
        compiler_params=pltpu.CompilerParams(
            dimension_semantics=("parallel", "arbitrary"),
            vmem_limit_bytes=vmem_limit),
        cost_estimate=cost,
    )(
        x,
        params["ln1_g"], params["ln1_b"],
        params["w_qkv"], params["w_out"], params["b_out"],
        params["ln2_g"], params["ln2_b"],
        params["w1"], params["b1"], params["w2"], params["b2"],
    )


# -----------------------------------------------------------------------------
# Deterministic parameter init + pure-JAX reference
# -----------------------------------------------------------------------------
def init_params(key, *, dim, depth, heads, dim_head, mlp_dim):
    inner = heads * dim_head
    w_qkv, w_out, w1, w2 = [], [], [], []
    for _ in range(depth):
        key, k1, k2, k3, k4 = jax.random.split(key, 5)
        w_qkv.append(jax.random.normal(k1, (dim, 3 * inner), jnp.float32) * 0.02)
        w_out.append(jax.random.normal(k2, (inner, dim), jnp.float32) * 0.02)
        w1.append(jax.random.normal(k3, (dim, mlp_dim), jnp.float32) * 0.02)
        w2.append(jax.random.normal(k4, (mlp_dim, dim), jnp.float32) * 0.02)
    return {
        "ln1_g": jnp.ones((depth, 1, dim), jnp.float32),
        "ln1_b": jnp.zeros((depth, 1, dim), jnp.float32),
        "w_qkv": jnp.stack(w_qkv),
        "w_out": jnp.stack(w_out),
        "b_out": jnp.zeros((depth, 1, dim), jnp.float32),
        "ln2_g": jnp.ones((depth, 1, dim), jnp.float32),
        "ln2_b": jnp.zeros((depth, 1, dim), jnp.float32),
        "w1": jnp.stack(w1),
        "b1": jnp.zeros((depth, 1, mlp_dim), jnp.float32),
        "w2": jnp.stack(w2),
        "b2": jnp.zeros((depth, 1, dim), jnp.float32),
    }


def to_kernel_params(p, *, heads, dim_head):
    """bf16 matmul weights (halves weight DMA bytes); softmax scale folded
    into the Q columns of W_qkv once (removes a per-layer VPU multiply)."""
    inner = heads * dim_head
    scale = jnp.float32(dim_head ** (-0.5))
    q = dict(p)
    wqkv = p["w_qkv"].astype(jnp.float32)
    wqkv = wqkv.at[:, :, :inner].multiply(scale)
    q["w_qkv"] = wqkv.astype(jnp.bfloat16)
    for name in ("w_out", "w1", "w2"):
        q[name] = p[name].astype(jnp.bfloat16)
    return q


def reference_forward(x, p, *, heads, dim_head):
    # Plain-JAX f32 reference of the PyTorch forward, for correctness checking.
    def ln(v, g, b):
        mu = jnp.mean(v, -1, keepdims=True)
        var = jnp.mean((v - mu) ** 2, -1, keepdims=True)
        return (v - mu) / jnp.sqrt(var + 1e-5) * g + b

    B, N, D = x.shape
    depth = p["w_qkv"].shape[0]
    inner = heads * dim_head
    scale = dim_head ** (-0.5)
    for l in range(depth):
        xn = ln(x, p["ln1_g"][l, 0], p["ln1_b"][l, 0])
        qkv = xn @ p["w_qkv"][l]
        q, k, v = jnp.split(qkv, 3, axis=-1)
        rs = lambda t: t.reshape(B, N, heads, dim_head).transpose(0, 2, 1, 3)
        q, k, v = rs(q), rs(k), rs(v)
        dots = jnp.einsum("bhnd,bhmd->bhnm", q, k) * scale
        attn = jax.nn.softmax(dots, axis=-1)
        out = jnp.einsum("bhnm,bhmd->bhnd", attn, v)
        out = out.transpose(0, 2, 1, 3).reshape(B, N, inner)
        x = out @ p["w_out"][l] + p["b_out"][l, 0] + x
        xn = ln(x, p["ln2_g"][l, 0], p["ln2_b"][l, 0])
        h = xn @ p["w1"][l] + p["b1"][l, 0]
        h = 0.5 * h * (1.0 + jax.lax.erf(h / jnp.sqrt(2.0)))
        x = h @ p["w2"][l] + p["b2"][l, 0] + x
    return x


# -----------------------------------------------------------------------------
if __name__ == "__main__":
    # Small shapes consistent with the module: dim=32, depth=2, heads=4,
    # dim_head=8, mlp_dim=64; input x: (batch=2, seq=8, dim=32).
    B, N, dim = 2, 8, 32
    depth, heads, dim_head, mlp_dim = 2, 4, 8, 64

    key = jax.random.PRNGKey(0)
    kx, kp = jax.random.split(key)
    x = jax.random.normal(kx, (B, N, dim), jnp.float32)
    params = init_params(kp, dim=dim, depth=depth, heads=heads,
                         dim_head=dim_head, mlp_dim=mlp_dim)

    out = transformer_forward(x, to_kernel_params(params, heads=heads, dim_head=dim_head),
                              heads=heads, dim_head=dim_head)
    out = jax.block_until_ready(out)

    ref = reference_forward(x, params, heads=heads, dim_head=dim_head)
    assert out.shape == (B, N, dim)
    max_err = float(jnp.max(jnp.abs(out - ref)))
    # bf16 MXU inputs + approx reciprocal -> loosened tolerance vs f32 reference.
    assert jnp.allclose(out, ref, atol=2e-2, rtol=2e-2), (
        f"mismatch vs JAX reference (max abs err {max_err})")

    print("KERNEL_OK")
</pallas_src>

<mosaic_0001>
module attributes {stable_mosaic.version = 11 : i64} {
  func.func @transformer_layer_kernel(%arg0: i32, %arg1: i32, %arg2: memref<2x8x32xf32, #tpu.memory_space<vmem>>, %arg3: memref<1x1x32xf32, #tpu.memory_space<vmem>>, %arg4: memref<1x1x32xf32, #tpu.memory_space<vmem>>, %arg5: memref<1x32x96xbf16, #tpu.memory_space<vmem>>, %arg6: memref<1x32x32xbf16, #tpu.memory_space<vmem>>, %arg7: memref<1x1x32xf32, #tpu.memory_space<vmem>>, %arg8: memref<1x1x32xf32, #tpu.memory_space<vmem>>, %arg9: memref<1x1x32xf32, #tpu.memory_space<vmem>>, %arg10: memref<1x32x64xbf16, #tpu.memory_space<vmem>>, %arg11: memref<1x1x64xf32, #tpu.memory_space<vmem>>, %arg12: memref<1x64x32xbf16, #tpu.memory_space<vmem>>, %arg13: memref<1x1x32xf32, #tpu.memory_space<vmem>>, %arg14: memref<2x8x32xf32, #tpu.memory_space<vmem>>, %arg15: memref<16x32xf32, #tpu.memory_space<vmem>>, %arg16: memref<16x32xbf16, #tpu.memory_space<vmem>>) attributes {dimension_semantics = [#tpu.dimension_semantics<parallel>, #tpu.dimension_semantics<arbitrary>], iteration_bounds = array<i64: 1, 2>, scalar_prefetch = 0 : i64, scratch_operands = 2 : i64, tpu.core_type = #tpu.core_type<tc>, window_params = [{transform_indices = @transform_0, window_bounds = array<i64: 2, 8, 32>}, {transform_indices = @transform_1, window_bounds = array<i64: 1, 1, 32>}, {transform_indices = @transform_2, window_bounds = array<i64: 1, 1, 32>}, {transform_indices = @transform_3, window_bounds = array<i64: 1, 32, 96>}, {transform_indices = @transform_4, window_bounds = array<i64: 1, 32, 32>}, {transform_indices = @transform_5, window_bounds = array<i64: 1, 1, 32>}, {transform_indices = @transform_6, window_bounds = array<i64: 1, 1, 32>}, {transform_indices = @transform_7, window_bounds = array<i64: 1, 1, 32>}, {transform_indices = @transform_8, window_bounds = array<i64: 1, 32, 64>}, {transform_indices = @transform_9, window_bounds = array<i64: 1, 1, 64>}, {transform_indices = @transform_10, window_bounds = array<i64: 1, 64, 32>}, {transform_indices = @transform_11, window_bounds = array<i64: 1, 1, 32>}, {transform_indices = @transform_12, window_bounds = array<i64: 2, 8, 32>}]} {
    %c0_i32 = arith.constant 0 : i32
    %0 = arith.cmpi eq, %arg1, %c0_i32 : i32
    %1 = arith.extui %0 : i1 to i32
    %c0_i32_0 = arith.constant 0 : i32
    %2 = arith.cmpi ne, %1, %c0_i32_0 : i32
    scf.if %2 {
      %c0_77 = arith.constant 0 : index
      %c0_78 = arith.constant 0 : index
      %c0_79 = arith.constant 0 : index
      %187 = vector.load %arg2[%c0_77, %c0_78, %c0_79] : memref<2x8x32xf32, #tpu.memory_space<vmem>>, vector<2x8x32xf32>
      %188 = vector.shape_cast %187 : vector<2x8x32xf32> to vector<16x32xf32>
      %c0_80 = arith.constant 0 : index
      %c0_81 = arith.constant 0 : index
      %189 = vector.load %arg15[%c0_80, %c0_81] : memref<16x32xf32, #tpu.memory_space<vmem>>, vector<16x32xf32>
      tpu.vector_store %arg15[%c0_80, %c0_81], %188 {strides = array<i32>} : memref<16x32xf32, #tpu.memory_space<vmem>>, vector<16x32xf32>,
    } else {
    }
    %c0 = arith.constant 0 : index
    %c0_1 = arith.constant 0 : index
    %3 = vector.load %arg15[%c0, %c0_1] : memref<16x32xf32, #tpu.memory_space<vmem>>, vector<16x32xf32>
    %c0_2 = arith.constant 0 : index
    %c0_3 = arith.constant 0 : index
    %c0_4 = arith.constant 0 : index
    %4 = vector.load %arg3[%c0_2, %c0_3, %c0_4] : memref<1x1x32xf32, #tpu.memory_space<vmem>>, vector<1x1x32xf32>
    %5 = vector.shape_cast %4 : vector<1x1x32xf32> to vector<1x32xf32>
    %c0_5 = arith.constant 0 : index
    %c0_6 = arith.constant 0 : index
    %c0_7 = arith.constant 0 : index
    %6 = vector.load %arg4[%c0_5, %c0_6, %c0_7] : memref<1x1x32xf32, #tpu.memory_space<vmem>>, vector<1x1x32xf32>
    %7 = vector.shape_cast %6 : vector<1x1x32xf32> to vector<1x32xf32>
    %cst = arith.constant dense<0.000000e+00> : vector<16xf32>
    %8 = vector.multi_reduction <add>, %3, %cst [1] : vector<16x32xf32> to vector<16xf32>
    %9 = vector.shape_cast %8 : vector<16xf32> to vector<16x1xf32>
    %cst_8 = arith.constant 3.200000e+01 : f32
    %10 = vector.broadcast %cst_8 : f32 to vector<16x1xf32>
    %11 = arith.divf %9, %10 : vector<16x1xf32>
    %12 = vector.broadcast %11 : vector<16x1xf32> to vector<16x32xf32>
    %13 = arith.subf %3, %12 : vector<16x32xf32>
    %14 = arith.mulf %13, %13 : vector<16x32xf32>
    %cst_9 = arith.constant dense<0.000000e+00> : vector<16xf32>
    %15 = vector.multi_reduction <add>, %14, %cst_9 [1] : vector<16x32xf32> to vector<16xf32>
    %16 = vector.shape_cast %15 : vector<16xf32> to vector<16x1xf32>
    %cst_10 = arith.constant 3.200000e+01 : f32
    %17 = vector.broadcast %cst_10 : f32 to vector<16x1xf32>
    %18 = arith.divf %16, %17 : vector<16x1xf32>
    %19 = vector.broadcast %11 : vector<16x1xf32> to vector<16x32xf32>
    %20 = arith.subf %3, %19 : vector<16x32xf32>
    %cst_11 = arith.constant 9.99999974E-6 : f32
    %21 = vector.broadcast %cst_11 : f32 to vector<16x1xf32>
    %22 = arith.addf %18, %21 : vector<16x1xf32>
    %23 = math.rsqrt %22 : vector<16x1xf32>
    %24 = vector.broadcast %23 : vector<16x1xf32> to vector<16x32xf32>
    %25 = arith.mulf %20, %24 : vector<16x32xf32>
    %26 = vector.broadcast %5 : vector<1x32xf32> to vector<16x32xf32>
    %27 = arith.mulf %25, %26 : vector<16x32xf32>
    %28 = vector.broadcast %7 : vector<1x32xf32> to vector<16x32xf32>
    %29 = arith.addf %27, %28 : vector<16x32xf32>
    %30 = arith.truncf %29 : vector<16x32xf32> to vector<16x32xbf16>
    %c0_12 = arith.constant 0 : index
    %c0_13 = arith.constant 0 : index
    %c0_14 = arith.constant 0 : index
    %31 = vector.load %arg5[%c0_12, %c0_13, %c0_14] : memref<1x32x96xbf16, #tpu.memory_space<vmem>>, vector<1x32x96xbf16>
    %32 = vector.shape_cast %31 : vector<1x32x96xbf16> to vector<32x96xbf16>
    %cst_15 = arith.constant dense<0.000000e+00> : vector<16x96xf32>
    %33 = tpu.matmul %30, %32, %cst_15 {dimension_numbers = #tpu.dot_dimension_numbers<[1], [0], [0], [1], [0, 0, 1, 1], [], []>} : vector<16x32xbf16>, vector<32x96xbf16>, vector<16x96xf32> -> vector<16x96xf32>
    %34 = vector.shape_cast %33 : vector<16x96xf32> to vector<2x8x96xf32>
    %35 = vector.extract_strided_slice %34 {offsets = [0, 0, 0], sizes = [2, 8, 8], strides = [1, 1, 1]} : vector<2x8x96xf32> to vector<2x8x8xf32>
    %36 = arith.truncf %35 : vector<2x8x8xf32> to vector<2x8x8xbf16>
    %37 = vector.extract_strided_slice %34 {offsets = [0, 0, 32], sizes = [2, 8, 8], strides = [1, 1, 1]} : vector<2x8x96xf32> to vector<2x8x8xf32>
    %38 = arith.truncf %37 : vector<2x8x8xf32> to vector<2x8x8xbf16>
    %39 = vector.extract_strided_slice %34 {offsets = [0, 0, 64], sizes = [2, 8, 8], strides = [1, 1, 1]} : vector<2x8x96xf32> to vector<2x8x8xf32>
    %40 = arith.truncf %39 : vector<2x8x8xf32> to vector<2x8x8xbf16>
    "tpu.trace_start"() <{level = 10 : i32, message = "bnd,bmd->bnm"}> : () -> ()
    %cst_16 = arith.constant dense<0.000000e+00> : vector<2x8x8xf32>
    %41 = tpu.matmul %36, %38, %cst_16 {dimension_numbers = #tpu.dot_dimension_numbers<[2], [2], [1], [1], [0, 0, 0, 1, 1, 1], [0], [0]>} : vector<2x8x8xbf16>, vector<2x8x8xbf16>, vector<2x8x8xf32> -> vector<2x8x8xf32>
    "tpu.trace_stop"() : () -> ()
    %cst_17 = arith.constant dense<0xFF800000> : vector<2x8xf32>
    %42 = vector.multi_reduction <maximumf>, %41, %cst_17 [2] : vector<2x8x8xf32> to vector<2x8xf32>
    %43 = vector.shape_cast %42 : vector<2x8xf32> to vector<2x8x1xf32>
    %44 = vector.broadcast %43 : vector<2x8x1xf32> to vector<2x8x8xf32>
    %45 = arith.subf %41, %44 : vector<2x8x8xf32>
    %46 = math.exp %45 : vector<2x8x8xf32>
    %cst_18 = arith.constant dense<0.000000e+00> : vector<2x8xf32>
    %47 = vector.multi_reduction <add>, %46, %cst_18 [2] : vector<2x8x8xf32> to vector<2x8xf32>
    %48 = vector.shape_cast %47 : vector<2x8xf32> to vector<2x8x1xf32>
    %49 = tpu.reciprocal %48 {approx = true} : vector<2x8x1xf32> -> vector<2x8x1xf32>
    %50 = vector.broadcast %49 : vector<2x8x1xf32> to vector<2x8x8xf32>
    %51 = arith.mulf %46, %50 : vector<2x8x8xf32>
    %52 = arith.truncf %51 : vector<2x8x8xf32> to vector<2x8x8xbf16>
    "tpu.trace_start"() <{level = 10 : i32, message = "bnm,bmd->bnd"}> : () -> ()
    %cst_19 = arith.constant dense<0.000000e+00> : vector<2x8x8xf32>
    %53 = tpu.matmul %52, %40, %cst_19 {dimension_numbers = #tpu.dot_dimension_numbers<[2], [1], [1], [2], [0, 0, 0, 1, 1, 2], [0], [0]>} : vector<2x8x8xbf16>, vector<2x8x8xbf16>, vector<2x8x8xf32> -> vector<2x8x8xf32>
    "tpu.trace_stop"() : () -> ()
    %54 = vector.shape_cast %53 : vector<2x8x8xf32> to vector<16x8xf32>
    %55 = arith.truncf %54 : vector<16x8xf32> to vector<16x8xbf16>
    %c0_20 = arith.constant 0 : index
    %c0_21 = arith.constant 0 : index
    %56 = vector.load %arg16[%c0_20, %c0_21] : memref<16x32xbf16, #tpu.memory_space<vmem>>, vector<16x8xbf16>
    tpu.vector_store %arg16[%c0_20, %c0_21], %55 {strides = array<i32>} : memref<16x32xbf16, #tpu.memory_space<vmem>>, vector<16x8xbf16>,
    %57 = vector.extract_strided_slice %34 {offsets = [0, 0, 8], sizes = [2, 8, 8], strides = [1, 1, 1]} : vector<2x8x96xf32> to vector<2x8x8xf32>
    %58 = arith.truncf %57 : vector<2x8x8xf32> to vector<2x8x8xbf16>
    %59 = vector.extract_strided_slice %34 {offsets = [0, 0, 40], sizes = [2, 8, 8], strides = [1, 1, 1]} : vector<2x8x96xf32> to vector<2x8x8xf32>
    %60 = arith.truncf %59 : vector<2x8x8xf32> to vector<2x8x8xbf16>
    %61 = vector.extract_strided_slice %34 {offsets = [0, 0, 72], sizes = [2, 8, 8], strides = [1, 1, 1]} : vector<2x8x96xf32> to vector<2x8x8xf32>
    %62 = arith.truncf %61 : vector<2x8x8xf32> to vector<2x8x8xbf16>
    "tpu.trace_start"() <{level = 10 : i32, message = "bnd,bmd->bnm"}> : () -> ()
    %cst_22 = arith.constant dense<0.000000e+00> : vector<2x8x8xf32>
    %63 = tpu.matmul %58, %60, %cst_22 {dimension_numbers = #tpu.dot_dimension_numbers<[2], [2], [1], [1], [0, 0, 0, 1, 1, 1], [0], [0]>} : vector<2x8x8xbf16>, vector<2x8x8xbf16>, vector<2x8x8xf32> -> vector<2x8x8xf32>
    "tpu.trace_stop"() : () -> ()
    %cst_23 = arith.constant dense<0xFF800000> : vector<2x8xf32>
    %64 = vector.multi_reduction <maximumf>, %63, %cst_23 [2] : vector<2x8x8xf32> to vector<2x8xf32>
    %65 = vector.shape_cast %64 : vector<2x8xf32> to vector<2x8x1xf32>
    %66 = vector.broadcast %65 : vector<2x8x1xf32> to vector<2x8x8xf32>
    %67 = arith.subf %63, %66 : vector<2x8x8xf32>
    %68 = math.exp %67 : vector<2x8x8xf32>
    %cst_24 = arith.constant dense<0.000000e+00> : vector<2x8xf32>
    %69 = vector.multi_reduction <add>, %68, %cst_24 [2] : vector<2x8x8xf32> to vector<2x8xf32>
    %70 = vector.shape_cast %69 : vector<2x8xf32> to vector<2x8x1xf32>
    %71 = tpu.reciprocal %70 {approx = true} : vector<2x8x1xf32> -> vector<2x8x1xf32>
    %72 = vector.broadcast %71 : vector<2x8x1xf32> to vector<2x8x8xf32>
    %73 = arith.mulf %68, %72 : vector<2x8x8xf32>
    %74 = arith.truncf %73 : vector<2x8x8xf32> to vector<2x8x8xbf16>
    "tpu.trace_start"() <{level = 10 : i32, message = "bnm,bmd->bnd"}> : () -> ()
    %cst_25 = arith.constant dense<0.000000e+00> : vector<2x8x8xf32>
    %75 = tpu.matmul %74, %62, %cst_25 {dimension_numbers = #tpu.dot_dimension_numbers<[2], [1], [1], [2], [0, 0, 0, 1, 1, 2], [0], [0]>} : vector<2x8x8xbf16>, vector<2x8x8xbf16>, vector<2x8x8xf32> -> vector<2x8x8xf32>
    "tpu.trace_stop"() : () -> ()
    %76 = vector.shape_cast %75 : vector<2x8x8xf32> to vector<16x8xf32>
    %77 = arith.truncf %76 : vector<16x8xf32> to vector<16x8xbf16>
    %c0_26 = arith.constant 0 : index
    %c8 = arith.constant 8 : index
    %78 = vector.load %arg16[%c0_26, %c8] : memref<16x32xbf16, #tpu.memory_space<vmem>>, vector<16x8xbf16>
    tpu.vector_store %arg16[%c0_26, %c8], %77 {strides = array<i32>} : memref<16x32xbf16, #tpu.memory_space<vmem>>, vector<16x8xbf16>,
    %79 = vector.extract_strided_slice %34 {offsets = [0, 0, 16], sizes = [2, 8, 8], strides = [1, 1, 1]} : vector<2x8x96xf32> to vector<2x8x8xf32>
    %80 = arith.truncf %79 : vector<2x8x8xf32> to vector<2x8x8xbf16>
    %81 = vector.extract_strided_slice %34 {offsets = [0, 0, 48], sizes = [2, 8, 8], strides = [1, 1, 1]} : vector<2x8x96xf32> to vector<2x8x8xf32>
    %82 = arith.truncf %81 : vector<2x8x8xf32> to vector<2x8x8xbf16>
    %83 = vector.extract_strided_slice %34 {offsets = [0, 0, 80], sizes = [2, 8, 8], strides = [1, 1, 1]} : vector<2x8x96xf32> to vector<2x8x8xf32>
    %84 = arith.truncf %83 : vector<2x8x8xf32> to vector<2x8x8xbf16>
    "tpu.trace_start"() <{level = 10 : i32, message = "bnd,bmd->bnm"}> : () -> ()
    %cst_27 = arith.constant dense<0.000000e+00> : vector<2x8x8xf32>
    %85 = tpu.matmul %80, %82, %cst_27 {dimension_numbers = #tpu.dot_dimension_numbers<[2], [2], [1], [1], [0, 0, 0, 1, 1, 1], [0], [0]>} : vector<2x8x8xbf16>, vector<2x8x8xbf16>, vector<2x8x8xf32> -> vector<2x8x8xf32>
    "tpu.trace_stop"() : () -> ()
    %cst_28 = arith.constant dense<0xFF800000> : vector<2x8xf32>
    %86 = vector.multi_reduction <maximumf>, %85, %cst_28 [2] : vector<2x8x8xf32> to vector<2x8xf32>
    %87 = vector.shape_cast %86 : vector<2x8xf32> to vector<2x8x1xf32>
    %88 = vector.broadcast %87 : vector<2x8x1xf32> to vector<2x8x8xf32>
    %89 = arith.subf %85, %88 : vector<2x8x8xf32>
    %90 = math.exp %89 : vector<2x8x8xf32>
    %cst_29 = arith.constant dense<0.000000e+00> : vector<2x8xf32>
    %91 = vector.multi_reduction <add>, %90, %cst_29 [2] : vector<2x8x8xf32> to vector<2x8xf32>
    %92 = vector.shape_cast %91 : vector<2x8xf32> to vector<2x8x1xf32>
    %93 = tpu.reciprocal %92 {approx = true} : vector<2x8x1xf32> -> vector<2x8x1xf32>
    %94 = vector.broadcast %93 : vector<2x8x1xf32> to vector<2x8x8xf32>
    %95 = arith.mulf %90, %94 : vector<2x8x8xf32>
    %96 = arith.truncf %95 : vector<2x8x8xf32> to vector<2x8x8xbf16>
    "tpu.trace_start"() <{level = 10 : i32, message = "bnm,bmd->bnd"}> : () -> ()
    %cst_30 = arith.constant dense<0.000000e+00> : vector<2x8x8xf32>
    %97 = tpu.matmul %96, %84, %cst_30 {dimension_numbers = #tpu.dot_dimension_numbers<[2], [1], [1], [2], [0, 0, 0, 1, 1, 2], [0], [0]>} : vector<2x8x8xbf16>, vector<2x8x8xbf16>, vector<2x8x8xf32> -> vector<2x8x8xf32>
    "tpu.trace_stop"() : () -> ()
    %98 = vector.shape_cast %97 : vector<2x8x8xf32> to vector<16x8xf32>
    %99 = arith.truncf %98 : vector<16x8xf32> to vector<16x8xbf16>
    %c0_31 = arith.constant 0 : index
    %c16 = arith.constant 16 : index
    %100 = vector.load %arg16[%c0_31, %c16] : memref<16x32xbf16, #tpu.memory_space<vmem>>, vector<16x8xbf16>
    tpu.vector_store %arg16[%c0_31, %c16], %99 {strides = array<i32>} : memref<16x32xbf16, #tpu.memory_space<vmem>>, vector<16x8xbf16>,
    %101 = vector.extract_strided_slice %34 {offsets = [0, 0, 24], sizes = [2, 8, 8], strides = [1, 1, 1]} : vector<2x8x96xf32> to vector<2x8x8xf32>
    %102 = arith.truncf %101 : vector<2x8x8xf32> to vector<2x8x8xbf16>
    %103 = vector.extract_strided_slice %34 {offsets = [0, 0, 56], sizes = [2, 8, 8], strides = [1, 1, 1]} : vector<2x8x96xf32> to vector<2x8x8xf32>
    %104 = arith.truncf %103 : vector<2x8x8xf32> to vector<2x8x8xbf16>
    %105 = vector.extract_strided_slice %34 {offsets = [0, 0, 88], sizes = [2, 8, 8], strides = [1, 1, 1]} : vector<2x8x96xf32> to vector<2x8x8xf32>
    %106 = arith.truncf %105 : vector<2x8x8xf32> to vector<2x8x8xbf16>
    "tpu.trace_start"() <{level = 10 : i32, message = "bnd,bmd->bnm"}> : () -> ()
    %cst_32 = arith.constant dense<0.000000e+00> : vector<2x8x8xf32>
    %107 = tpu.matmul %102, %104, %cst_32 {dimension_numbers = #tpu.dot_dimension_numbers<[2], [2], [1], [1], [0, 0, 0, 1, 1, 1], [0], [0]>} : vector<2x8x8xbf16>, vector<2x8x8xbf16>, vector<2x8x8xf32> -> vector<2x8x8xf32>
    "tpu.trace_stop"() : () -> ()
    %cst_33 = arith.constant dense<0xFF800000> : vector<2x8xf32>
    %108 = vector.multi_reduction <maximumf>, %107, %cst_33 [2] : vector<2x8x8xf32> to vector<2x8xf32>
    %109 = vector.shape_cast %108 : vector<2x8xf32> to vector<2x8x1xf32>
    %110 = vector.broadcast %109 : vector<2x8x1xf32> to vector<2x8x8xf32>
    %111 = arith.subf %107, %110 : vector<2x8x8xf32>
    %112 = math.exp %111 : vector<2x8x8xf32>
    %cst_34 = arith.constant dense<0.000000e+00> : vector<2x8xf32>
    %113 = vector.multi_reduction <add>, %112, %cst_34 [2] : vector<2x8x8xf32> to vector<2x8xf32>
    %114 = vector.shape_cast %113 : vector<2x8xf32> to vector<2x8x1xf32>
    %115 = tpu.reciprocal %114 {approx = true} : vector<2x8x1xf32> -> vector<2x8x1xf32>
    %116 = vector.broadcast %115 : vector<2x8x1xf32> to vector<2x8x8xf32>
    %117 = arith.mulf %112, %116 : vector<2x8x8xf32>
    %118 = arith.truncf %117 : vector<2x8x8xf32> to vector<2x8x8xbf16>
    "tpu.trace_start"() <{level = 10 : i32, message = "bnm,bmd->bnd"}> : () -> ()
    %cst_35 = arith.constant dense<0.000000e+00> : vector<2x8x8xf32>
    %119 = tpu.matmul %118, %106, %cst_35 {dimension_numbers = #tpu.dot_dimension_numbers<[2], [1], [1], [2], [0, 0, 0, 1, 1, 2], [0], [0]>} : vector<2x8x8xbf16>, vector<2x8x8xbf16>, vector<2x8x8xf32> -> vector<2x8x8xf32>
    "tpu.trace_stop"() : () -> ()
    %120 = vector.shape_cast %119 : vector<2x8x8xf32> to vector<16x8xf32>
    %121 = arith.truncf %120 : vector<16x8xf32> to vector<16x8xbf16>
    %c0_36 = arith.constant 0 : index
    %c24 = arith.constant 24 : index
    %122 = vector.load %arg16[%c0_36, %c24] : memref<16x32xbf16, #tpu.memory_space<vmem>>, vector<16x8xbf16>
    tpu.vector_store %arg16[%c0_36, %c24], %121 {strides = array<i32>} : memref<16x32xbf16, #tpu.memory_space<vmem>>, vector<16x8xbf16>,
    %c0_37 = arith.constant 0 : index
    %c0_38 = arith.constant 0 : index
    %123 = vector.load %arg16[%c0_37, %c0_38] : memref<16x32xbf16, #tpu.memory_space<vmem>>, vector<16x32xbf16>
    %c0_39 = arith.constant 0 : index
    %c0_40 = arith.constant 0 : index
    %c0_41 = arith.constant 0 : index
    %124 = vector.load %arg6[%c0_39, %c0_40, %c0_41] : memref<1x32x32xbf16, #tpu.memory_space<vmem>>, vector<1x32x32xbf16>
    %125 = vector.shape_cast %124 : vector<1x32x32xbf16> to vector<32x32xbf16>
    %cst_42 = arith.constant dense<0.000000e+00> : vector<16x32xf32>
    %126 = tpu.matmul %123, %125, %cst_42 {dimension_numbers = #tpu.dot_dimension_numbers<[1], [0], [0], [1], [0, 0, 1, 1], [], []>} : vector<16x32xbf16>, vector<32x32xbf16>, vector<16x32xf32> -> vector<16x32xf32>
    %c0_43 = arith.constant 0 : index
    %c0_44 = arith.constant 0 : index
    %c0_45 = arith.constant 0 : index
    %127 = vector.load %arg7[%c0_43, %c0_44, %c0_45] : memref<1x1x32xf32, #tpu.memory_space<vmem>>, vector<1x1x32xf32>
    %128 = vector.shape_cast %127 : vector<1x1x32xf32> to vector<1x32xf32>
    %129 = vector.broadcast %128 : vector<1x32xf32> to vector<16x32xf32>
    %130 = arith.addf %126, %129 : vector<16x32xf32>
    %131 = arith.addf %3, %130 : vector<16x32xf32>
    %c0_46 = arith.constant 0 : index
    %c0_47 = arith.constant 0 : index
    %c0_48 = arith.constant 0 : index
    %132 = vector.load %arg8[%c0_46, %c0_47, %c0_48] : memref<1x1x32xf32, #tpu.memory_space<vmem>>, vector<1x1x32xf32>
    %133 = vector.shape_cast %132 : vector<1x1x32xf32> to vector<1x32xf32>
    %c0_49 = arith.constant 0 : index
    %c0_50 = arith.constant 0 : index
    %c0_51 = arith.constant 0 : index
    %134 = vector.load %arg9[%c0_49, %c0_50, %c0_51] : memref<1x1x32xf32, #tpu.memory_space<vmem>>, vector<1x1x32xf32>
    %135 = vector.shape_cast %134 : vector<1x1x32xf32> to vector<1x32xf32>
    %cst_52 = arith.constant dense<0.000000e+00> : vector<16xf32>
    %136 = vector.multi_reduction <add>, %131, %cst_52 [1] : vector<16x32xf32> to vector<16xf32>
    %137 = vector.shape_cast %136 : vector<16xf32> to vector<16x1xf32>
    %cst_53 = arith.constant 3.200000e+01 : f32
    %138 = vector.broadcast %cst_53 : f32 to vector<16x1xf32>
    %139 = arith.divf %137, %138 : vector<16x1xf32>
    %140 = vector.broadcast %139 : vector<16x1xf32> to vector<16x32xf32>
    %141 = arith.subf %131, %140 : vector<16x32xf32>
    %142 = arith.mulf %141, %141 : vector<16x32xf32>
    %cst_54 = arith.constant dense<0.000000e+00> : vector<16xf32>
    %143 = vector.multi_reduction <add>, %142, %cst_54 [1] : vector<16x32xf32> to vector<16xf32>
    %144 = vector.shape_cast %143 : vector<16xf32> to vector<16x1xf32>
    %cst_55 = arith.constant 3.200000e+01 : f32
    %145 = vector.broadcast %cst_55 : f32 to vector<16x1xf32>
    %146 = arith.divf %144, %145 : vector<16x1xf32>
    %147 = vector.broadcast %139 : vector<16x1xf32> to vector<16x32xf32>
    %148 = arith.subf %131, %147 : vector<16x32xf32>
    %cst_56 = arith.constant 9.99999974E-6 : f32
    %149 = vector.broadcast %cst_56 : f32 to vector<16x1xf32>
    %150 = arith.addf %146, %149 : vector<16x1xf32>
    %151 = math.rsqrt %150 : vector<16x1xf32>
    %152 = vector.broadcast %151 : vector<16x1xf32> to vector<16x32xf32>
    %153 = arith.mulf %148, %152 : vector<16x32xf32>
    %154 = vector.broadcast %133 : vector<1x32xf32> to vector<16x32xf32>
    %155 = arith.mulf %153, %154 : vector<16x32xf32>
    %156 = vector.broadcast %135 : vector<1x32xf32> to vector<16x32xf32>
    %157 = arith.addf %155, %156 : vector<16x32xf32>
    %158 = arith.truncf %157 : vector<16x32xf32> to vector<16x32xbf16>
    %c0_57 = arith.constant 0 : index
    %c0_58 = arith.constant 0 : index
    %c0_59 = arith.constant 0 : index
    %159 = vector.load %arg10[%c0_57, %c0_58, %c0_59] : memref<1x32x64xbf16, #tpu.memory_space<vmem>>, vector<1x32x64xbf16>
    %160 = vector.shape_cast %159 : vector<1x32x64xbf16> to vector<32x64xbf16>
    %cst_60 = arith.constant dense<0.000000e+00> : vector<16x64xf32>
    %161 = tpu.matmul %158, %160, %cst_60 {dimension_numbers = #tpu.dot_dimension_numbers<[1], [0], [0], [1], [0, 0, 1, 1], [], []>} : vector<16x32xbf16>, vector<32x64xbf16>, vector<16x64xf32> -> vector<16x64xf32>
    %c0_61 = arith.constant 0 : index
    %c0_62 = arith.constant 0 : index
    %c0_63 = arith.constant 0 : index
    %162 = vector.load %arg11[%c0_61, %c0_62, %c0_63] : memref<1x1x64xf32, #tpu.memory_space<vmem>>, vector<1x1x64xf32>
    %163 = vector.shape_cast %162 : vector<1x1x64xf32> to vector<1x64xf32>
    %164 = vector.broadcast %163 : vector<1x64xf32> to vector<16x64xf32>
    %165 = arith.addf %161, %164 : vector<16x64xf32>
    %cst_64 = arith.constant 5.000000e-01 : f32
    %166 = vector.broadcast %cst_64 : f32 to vector<16x64xf32>
    %167 = arith.mulf %166, %165 : vector<16x64xf32>
    %cst_65 = arith.constant 0.707106769 : f32
    %168 = vector.broadcast %cst_65 : f32 to vector<16x64xf32>
    %169 = arith.mulf %165, %168 : vector<16x64xf32>
    %170 = math.erf %169 : vector<16x64xf32>
    %cst_66 = arith.constant 1.000000e+00 : f32
    %171 = vector.broadcast %cst_66 : f32 to vector<16x64xf32>
    %172 = arith.addf %171, %170 : vector<16x64xf32>
    %173 = arith.mulf %167, %172 : vector<16x64xf32>
    %174 = arith.truncf %173 : vector<16x64xf32> to vector<16x64xbf16>
    %c0_67 = arith.constant 0 : index
    %c0_68 = arith.constant 0 : index
    %c0_69 = arith.constant 0 : index
    %175 = vector.load %arg12[%c0_67, %c0_68, %c0_69] : memref<1x64x32xbf16, #tpu.memory_space<vmem>>, vector<1x64x32xbf16>
    %176 = vector.shape_cast %175 : vector<1x64x32xbf16> to vector<64x32xbf16>
    %cst_70 = arith.constant dense<0.000000e+00> : vector<16x32xf32>
    %177 = tpu.matmul %174, %176, %cst_70 {dimension_numbers = #tpu.dot_dimension_numbers<[1], [0], [0], [1], [0, 0, 1, 1], [], []>} : vector<16x64xbf16>, vector<64x32xbf16>, vector<16x32xf32> -> vector<16x32xf32>
    %c0_71 = arith.constant 0 : index
    %c0_72 = arith.constant 0 : index
    %c0_73 = arith.constant 0 : index
    %178 = vector.load %arg13[%c0_71, %c0_72, %c0_73] : memref<1x1x32xf32, #tpu.memory_space<vmem>>, vector<1x1x32xf32>
    %179 = vector.shape_cast %178 : vector<1x1x32xf32> to vector<1x32xf32>
    %180 = vector.broadcast %179 : vector<1x32xf32> to vector<16x32xf32>
    %181 = arith.addf %177, %180 : vector<16x32xf32>
    %182 = arith.addf %131, %181 : vector<16x32xf32>
    %c0_74 = arith.constant 0 : index
    %c0_75 = arith.constant 0 : index
    %183 = vector.load %arg15[%c0_74, %c0_75] : memref<16x32xf32, #tpu.memory_space<vmem>>, vector<16x32xf32>
    tpu.vector_store %arg15[%c0_74, %c0_75], %182 {strides = array<i32>} : memref<16x32xf32, #tpu.memory_space<vmem>>, vector<16x32xf32>,
    %c1_i32 = arith.constant 1 : i32
    %184 = arith.cmpi eq, %arg1, %c1_i32 : i32
    %185 = arith.extui %184 : i1 to i32
    %c0_i32_76 = arith.constant 0 : i32
    %186 = arith.cmpi ne, %185, %c0_i32_76 : i32
    scf.if %186 {
      %187 = vector.shape_cast %182 : vector<16x32xf32> to vector<2x8x32xf32>
      %c0_77 = arith.constant 0 : index
      %c0_78 = arith.constant 0 : index
      %c0_79 = arith.constant 0 : index
      %188 = vector.load %arg14[%c0_77, %c0_78, %c0_79] : memref<2x8x32xf32, #tpu.memory_space<vmem>>, vector<2x8x32xf32>
      tpu.vector_store %arg14[%c0_77, %c0_78, %c0_79], %187 {strides = array<i32>} : memref<2x8x32xf32, #tpu.memory_space<vmem>>, vector<2x8x32xf32>,
    } else {
    }
    return
  }
  func.func @transform_0(%arg0: i32, %arg1: i32) -> (i32, i32, i32) {
    %c0_i32 = arith.constant 0 : i32
    %c0_i32_0 = arith.constant 0 : i32
    %c0_i32_1 = arith.constant 0 : i32
    return %arg0, %c0_i32, %c0_i32_0 : i32, i32, i32
  }
  func.func @transform_1(%arg0: i32, %arg1: i32) -> (i32, i32, i32) {
    %c0_i32 = arith.constant 0 : i32
    %c0_i32_0 = arith.constant 0 : i32
    %c0_i32_1 = arith.constant 0 : i32
    return %arg1, %c0_i32, %c0_i32_0 : i32, i32, i32
  }
  func.func @transform_2(%arg0: i32, %arg1: i32) -> (i32, i32, i32) {
    %c0_i32 = arith.constant 0 : i32
    %c0_i32_0 = arith.constant 0 : i32
    %c0_i32_1 = arith.constant 0 : i32
    return %arg1, %c0_i32, %c0_i32_0 : i32, i32, i32
  }
  func.func @transform_3(%arg0: i32, %arg1: i32) -> (i32, i32, i32) {
    %c0_i32 = arith.constant 0 : i32
    %c0_i32_0 = arith.constant 0 : i32
    %c0_i32_1 = arith.constant 0 : i32
    return %arg1, %c0_i32, %c0_i32_0 : i32, i32, i32
  }
  func.func @transform_4(%arg0: i32, %arg1: i32) -> (i32, i32, i32) {
    %c0_i32 = arith.constant 0 : i32
    %c0_i32_0 = arith.constant 0 : i32
    %c0_i32_1 = arith.constant 0 : i32
    return %arg1, %c0_i32, %c0_i32_0 : i32, i32, i32
  }
  func.func @transform_5(%arg0: i32, %arg1: i32) -> (i32, i32, i32) {
    %c0_i32 = arith.constant 0 : i32
    %c0_i32_0 = arith.constant 0 : i32
    %c0_i32_1 = arith.constant 0 : i32
    return %arg1, %c0_i32, %c0_i32_0 : i32, i32, i32
  }
  func.func @transform_6(%arg0: i32, %arg1: i32) -> (i32, i32, i32) {
    %c0_i32 = arith.constant 0 : i32
    %c0_i32_0 = arith.constant 0 : i32
    %c0_i32_1 = arith.constant 0 : i32
    return %arg1, %c0_i32, %c0_i32_0 : i32, i32, i32
  }
  func.func @transform_7(%arg0: i32, %arg1: i32) -> (i32, i32, i32) {
    %c0_i32 = arith.constant 0 : i32
    %c0_i32_0 = arith.constant 0 : i32
    %c0_i32_1 = arith.constant 0 : i32
    return %arg1, %c0_i32, %c0_i32_0 : i32, i32, i32
  }
  func.func @transform_8(%arg0: i32, %arg1: i32) -> (i32, i32, i32) {
    %c0_i32 = arith.constant 0 : i32
    %c0_i32_0 = arith.constant 0 : i32
    %c0_i32_1 = arith.constant 0 : i32
    return %arg1, %c0_i32, %c0_i32_0 : i32, i32, i32
  }
  func.func @transform_9(%arg0: i32, %arg1: i32) -> (i32, i32, i32) {
    %c0_i32 = arith.constant 0 : i32
    %c0_i32_0 = arith.constant 0 : i32
    %c0_i32_1 = arith.constant 0 : i32
    return %arg1, %c0_i32, %c0_i32_0 : i32, i32, i32
  }
  func.func @transform_10(%arg0: i32, %arg1: i32) -> (i32, i32, i32) {
    %c0_i32 = arith.constant 0 : i32
    %c0_i32_0 = arith.constant 0 : i32
    %c0_i32_1 = arith.constant 0 : i32
    return %arg1, %c0_i32, %c0_i32_0 : i32, i32, i32
  }
  func.func @transform_11(%arg0: i32, %arg1: i32) -> (i32, i32, i32) {
    %c0_i32 = arith.constant 0 : i32
    %c0_i32_0 = arith.constant 0 : i32
    %c0_i32_1 = arith.constant 0 : i32
    return %arg1, %c0_i32, %c0_i32_0 : i32, i32, i32
  }
  func.func @transform_12(%arg0: i32, %arg1: i32) -> (i32, i32, i32) {
    %c0_i32 = arith.constant 0 : i32
    %c0_i32_0 = arith.constant 0 : i32
    %c0_i32_1 = arith.constant 0 : i32
    return %arg0, %c0_i32, %c0_i32_0 : i32, i32, i32
  }
}

</mosaic_0001>

<llo_original>
// kernel: tpu_custom_call.1
$region0: #{tpu_custom_call.1}
  #allocation0 [shape = 'u32[]', space=smem, size = 0x4, offset = 0x4, fixed_abs, tag = 'smem constant byte address 0x4 - core index']
  #allocation1 [shape = 'u32[72,128]{1,0:T(1,128)}', space=vmem, size = 0x9000, scoped, tag = 'internal scratch']
  #allocation2 [shape = 'f32[16,32]{1,0:T(8,128)}', space=vmem, size = 0x2000, scoped, tag = 'scratch operand']
  #allocation3 [shape = 'bf16[16,32]{1,0:T(8,128)(2,1)}', space=vmem, size = 0x1000, scoped, tag = 'scratch operand']
  %s0 = inlined_call_operand.hbm [shape: f32[2,8,32], index: 0, kind: input, shape index: {}]
  %s1 = inlined_call_operand.hbm [shape: f32[2,1,32], index: 1, kind: input, shape index: {}]
  %s2 = inlined_call_operand.hbm [shape: f32[2,1,32], index: 2, kind: input, shape index: {}]
  %s3 = inlined_call_operand.vmem [shape: bf16[2,32,96], index: 3, kind: input, shape index: {}]
  %s4 = inlined_call_operand.vmem [shape: bf16[2,32,32], index: 4, kind: input, shape index: {}]
  %s5 = inlined_call_operand.vmem [shape: f32[2,1,32], index: 5, kind: input, shape index: {}]
  %s6 = inlined_call_operand.vmem [shape: f32[2,1,32], index: 6, kind: input, shape index: {}]
  %s7 = inlined_call_operand.hbm [shape: f32[2,1,32], index: 7, kind: input, shape index: {}]
  %s8 = inlined_call_operand.vmem [shape: bf16[2,32,64], index: 8, kind: input, shape index: {}]
  %s9 = inlined_call_operand.vmem [shape: f32[2,1,64], index: 9, kind: input, shape index: {}]
  %s10 = inlined_call_operand.vmem [shape: bf16[2,64,32], index: 10, kind: input, shape index: {}]
  %s11 = inlined_call_operand.vmem [shape: f32[2,1,32], index: 11, kind: input, shape index: {}]
  %s12 = inlined_call_operand.hbm [shape: f32[2,8,32], index: 12, kind: output, shape index: {}]
  %s13 = sld [smem:[#allocation0]]
  $region105: #{tpu_custom_call.1} parent=0
    _
  %s15 = ssub.s32 1, %s13
  %s16 = scalar_select 0, %s15, %s13
  $region1: #{tpu_custom_call.1} parent=0
    #allocation4 [shape = 'u8[8192]{0}', space=vmem, size = 0x2000, scoped, tag = 'input window, operand 0, single buffered']
    #allocation5 [shape = 's32[2]{0}', space=sflag, size = 0x8, scoped, tag = 'scoped memory for tpu_custom_call.1']
    #allocation6 [shape = 's32[2]{0}', space=sflag, size = 0x8, scoped, tag = 'scoped memory for tpu_custom_call.1']
    #allocation7 [shape = 'u8[1024]{0}', space=vmem, size = 0x400, scoped, tag = 'input window, operand 1']
    #allocation8 [shape = 's32[2]{0}', space=sflag, size = 0x8, scoped, tag = 'scoped memory for tpu_custom_call.1']
    #allocation9 [shape = 'u8[1024]{0}', space=vmem, size = 0x400, scoped, tag = 'input window, operand 2']
    #allocation10 [shape = 'u8[1024]{0}', space=vmem, size = 0x400, scoped, tag = 'input window, operand 7']
    #allocation11 [shape = 's32[2]{0}', space=sflag, size = 0x8, scoped, tag = 'scoped memory for tpu_custom_call.1']
    #allocation12 [shape = 'u8[8192]{0}', space=vmem, size = 0x2000, scoped, tag = 'output window, operand 0, single buffered']
    %17 = vsyncpa [#allocation5], 0
    %18 = vsyncpa [#allocation8], 0
    %s19 = scalar_lea.sflag [#allocation8], 1
    %20 = vsyncpa %s19, 0
    %21 = vsyncpa [#allocation11], 0
    %s22 = scalar_lea.sflag [#allocation11], 1
    %23 = vsyncpa %s22, 0
    %24 = vsyncpa [#allocation6], 0
    loop: start=0, step=1, limit=4
    $region2: #{tpu_custom_call.1} parent=1 // loop_pre_header
      _
    $region3: #{tpu_custom_call.1} parent=1 // loop_header
      %s26 = sphi 0, %s30
      %p27 = scmp.ge.s32.totalorder %s26, 4
      %s33 = sphi 0, %s45
      %s34 = sphi 0, %s41
      %s35 = sphi 0, %s33
      %s36 = sphi 0, %s34
      %s37 = sphi 0, %s35
      %s38 = sphi 0, %s36
      %s48 = sphi 0, %s50
      %s51 = sphi 0, %s48
      %s52 = sphi 0, %s51
      %s68 = sphi 0, %s52
      %s74 = sphi 0, %s76
      %s77 = sphi 0, %s74
      %s78 = sphi 0, %s77
      %s94 = sphi 0, %s78
      %s100 = sphi 0, %s102
      %s103 = sphi 0, %s100
      %s104 = sphi 0, %s103
      %s120 = sphi 0, %s104
      %s126 = sphi 0, %s128
      %s129 = sphi 0, %s126
      %s130 = sphi 0, %s129
      %s146 = sphi 0, %s130
      %s152 = sphi 0, %s154
      %s155 = sphi 0, %s152
      %s156 = sphi 0, %s155
      %s172 = sphi 0, %s156
      %s178 = sphi 0, %s180
      %s181 = sphi 0, %s178
      %s182 = sphi 0, %s181
      %s198 = sphi 0, %s182
      %s204 = sphi 0, %s206
      %s207 = sphi 0, %s204
      %s208 = sphi 0, %s207
      %s224 = sphi 0, %s208
      %s230 = sphi 0, %s232
      %s233 = sphi 0, %s230
      %s234 = sphi 0, %s233
      %s250 = sphi 0, %s234
      %s256 = sphi 0, %s258
      %s259 = sphi 0, %s256
      %s260 = sphi 0, %s259
      %s276 = sphi 0, %s260
      %s282 = sphi 0, %s284
      %s285 = sphi 0, %s282
      %s286 = sphi 0, %s285
      %s302 = sphi 0, %s286
      %s308 = sphi 0, %s310
      %s311 = sphi 0, %s308
      %s312 = sphi 0, %s311
      %s328 = sphi 0, %s312
      %s334 = sphi 0, %s336
      %s337 = sphi 0, %s334
      %s338 = sphi 0, %s337
      %s354 = sphi 0, %s338
      %s360 = sphi 0, %s362
      %s363 = sphi 0, %s360
      %s364 = sphi 0, %s363
      %s380 = sphi 0, %s364
    $region4: #{tpu_custom_call.1} parent=1 // loop_header_branch
      %29 = sbr.rel (%p27) target = $region8
    $region5: #{tpu_custom_call.1} parent=1 // loop_body
      %s31 = ssub.s32 %s26, 1
      %s32 = ssub.s32 %s26, 2
      %s39 = sadd.s32 1, %s34
      %p40 = scmp.ge.s32.totalorder %s39, 2
      %s41 = scalar_select %p40, 0, %s39
      %s42 = sadd.s32 1, %s33
      %s43 = scalar_select %p40, %s42, %s33
      %p44 = scmp.ge.s32.totalorder %s43, 1
      %s45 = scalar_select %p44, 0, %s43
      %s46 = ssub.s32 %s33, %s45
      %p47 = scmp.eq.s32.totalorder %s46, 0
      %s49 = sadd.s32 %s48, 1
      %s50 = scalar_select %p47, %s48, %s49
      %p53 = pneg %p47
      %p54 = scmp.eq.s32.totalorder %s26, 1
      %p55 = por %p53, %p54
      %p56 = scmp.ne.s32.totalorder %s48, %s51
      %p57 = scmp.eq.s32.totalorder %s26, 0
      %p58 = por %p56, %p57
      %p59 = scmp.ne.s32.totalorder %s48, %s51
      %p60 = scmp.eq.s32.totalorder %s31, 1
      %p61 = por %p59, %p60
      %p62 = scmp.ne.s32.totalorder %s51, %s52
      %p63 = scmp.eq.s32.totalorder %s31, 0
      %p64 = por %p62, %p63
      %p65 = scmp.ne.s32.totalorder %s51, %s52
      %p66 = scmp.eq.s32.totalorder %s32, 1
      %p67 = por %p65, %p66
      %p69 = scmp.ne.s32.totalorder %s52, %s68
      %p70 = scmp.eq.s32.totalorder %s32, 0
      %p71 = por %p69, %p70
      %s72 = ssub.s32 %s34, %s41
      %p73 = scmp.eq.s32.totalorder %s72, 0
      %s75 = sadd.s32 %s74, 1
      %s76 = scalar_select %p73, %s74, %s75
      %p79 = pneg %p73
      %p80 = scmp.eq.s32.totalorder %s26, 1
      %p81 = por %p79, %p80
      %p82 = scmp.ne.s32.totalorder %s74, %s77
      %p83 = scmp.eq.s32.totalorder %s26, 0
      %p84 = por %p82, %p83
      %p85 = scmp.ne.s32.totalorder %s74, %s77
      %p86 = scmp.eq.s32.totalorder %s31, 1
      %p87 = por %p85, %p86
      %p88 = scmp.ne.s32.totalorder %s77, %s78
      %p89 = scmp.eq.s32.totalorder %s31, 0
      %p90 = por %p88, %p89
      %p91 = scmp.ne.s32.totalorder %s77, %s78
      %p92 = scmp.eq.s32.totalorder %s32, 1
      %p93 = por %p91, %p92
      %p95 = scmp.ne.s32.totalorder %s78, %s94
      %p96 = scmp.eq.s32.totalorder %s32, 0
      %p97 = por %p95, %p96
      %s98 = ssub.s32 %s34, %s41
      %p99 = scmp.eq.s32.totalorder %s98, 0
      %s101 = sadd.s32 %s100, 1
      %s102 = scalar_select %p99, %s100, %s101
      %p105 = pneg %p99
      %p106 = scmp.eq.s32.totalorder %s26, 1
      %p107 = por %p105, %p106
      %p108 = scmp.ne.s32.totalorder %s100, %s103
      %p109 = scmp.eq.s32.totalorder %s26, 0
      %p110 = por %p108, %p109
      %p111 = scmp.ne.s32.totalorder %s100, %s103
      %p112 = scmp.eq.s32.totalorder %s31, 1
      %p113 = por %p111, %p112
      %p114 = scmp.ne.s32.totalorder %s103, %s104
      %p115 = scmp.eq.s32.totalorder %s31, 0
      %p116 = por %p114, %p115
      %p117 = scmp.ne.s32.totalorder %s103, %s104
      %p118 = scmp.eq.s32.totalorder %s32, 1
      %p119 = por %p117, %p118
      %p121 = scmp.ne.s32.totalorder %s104, %s120
      %p122 = scmp.eq.s32.totalorder %s32, 0
      %p123 = por %p121, %p122
      %s124 = ssub.s32 %s34, %s41
      %p125 = scmp.eq.s32.totalorder %s124, 0
      %s127 = sadd.s32 %s126, 1
      %s128 = scalar_select %p125, %s126, %s127
      %p131 = pneg %p125
      %p132 = scmp.eq.s32.totalorder %s26, 1
      %p133 = por %p131, %p132
      %p134 = scmp.ne.s32.totalorder %s126, %s129
      %p135 = scmp.eq.s32.totalorder %s26, 0
      %p136 = por %p134, %p135
      %p137 = scmp.ne.s32.totalorder %s126, %s129
      %p138 = scmp.eq.s32.totalorder %s31, 1
      %p139 = por %p137, %p138
      %p140 = scmp.ne.s32.totalorder %s129, %s130
      %p141 = scmp.eq.s32.totalorder %s31, 0
      %p142 = por %p140, %p141
      %p143 = scmp.ne.s32.totalorder %s129, %s130
      %p144 = scmp.eq.s32.totalorder %s32, 1
      %p145 = por %p143, %p144
      %p147 = scmp.ne.s32.totalorder %s130, %s146
      %p148 = scmp.eq.s32.totalorder %s32, 0
      %p149 = por %p147, %p148
      %s150 = ssub.s32 %s34, %s41
      %p151 = scmp.eq.s32.totalorder %s150, 0
      %s153 = sadd.s32 %s152, 1
      %s154 = scalar_select %p151, %s152, %s153
      %p157 = pneg %p151
      %p158 = scmp.eq.s32.totalorder %s26, 1
      %p159 = por %p157, %p158
      %p160 = scmp.ne.s32.totalorder %s152, %s155
      %p161 = scmp.eq.s32.totalorder %s26, 0
      %p162 = por %p160, %p161
      %p163 = scmp.ne.s32.totalorder %s152, %s155
      %p164 = scmp.eq.s32.totalorder %s31, 1
      %p165 = por %p163, %p164
      %p166 = scmp.ne.s32.totalorder %s155, %s156
      %p167 = scmp.eq.s32.totalorder %s31, 0
      %p168 = por %p166, %p167
      %p169 = scmp.ne.s32.totalorder %s155, %s156
      %p170 = scmp.eq.s32.totalorder %s32, 1
      %p171 = por %p169, %p170
      %p173 = scmp.ne.s32.totalorder %s156, %s172
      %p174 = scmp.eq.s32.totalorder %s32, 0
      %p175 = por %p173, %p174
      %s176 = ssub.s32 %s34, %s41
      %p177 = scmp.eq.s32.totalorder %s176, 0
      %s179 = sadd.s32 %s178, 1
      %s180 = scalar_select %p177, %s178, %s179
      %p183 = pneg %p177
      %p184 = scmp.eq.s32.totalorder %s26, 1
      %p185 = por %p183, %p184
      %p186 = scmp.ne.s32.totalorder %s178, %s181
      %p187 = scmp.eq.s32.totalorder %s26, 0
      %p188 = por %p186, %p187
      %p189 = scmp.ne.s32.totalorder %s178, %s181
      %p190 = scmp.eq.s32.totalorder %s31, 1
      %p191 = por %p189, %p190
      %p192 = scmp.ne.s32.totalorder %s181, %s182
      %p193 = scmp.eq.s32.totalorder %s31, 0
      %p194 = por %p192, %p193
      %p195 = scmp.ne.s32.totalorder %s181, %s182
      %p196 = scmp.eq.s32.totalorder %s32, 1
      %p197 = por %p195, %p196
      %p199 = scmp.ne.s32.totalorder %s182, %s198
      %p200 = scmp.eq.s32.totalorder %s32, 0
      %p201 = por %p199, %p200
      %s202 = ssub.s32 %s34, %s41
      %p203 = scmp.eq.s32.totalorder %s202, 0
      %s205 = sadd.s32 %s204, 1
      %s206 = scalar_select %p203, %s204, %s205
      %p209 = pneg %p203
      %p210 = scmp.eq.s32.totalorder %s26, 1
      %p211 = por %p209, %p210
      %p212 = scmp.ne.s32.totalorder %s204, %s207
      %p213 = scmp.eq.s32.totalorder %s26, 0
      %p214 = por %p212, %p213
      %p215 = scmp.ne.s32.totalorder %s204, %s207
      %p216 = scmp.eq.s32.totalorder %s31, 1
      %p217 = por %p215, %p216
      %p218 = scmp.ne.s32.totalorder %s207, %s208
      %p219 = scmp.eq.s32.totalorder %s31, 0
      %p220 = por %p218, %p219
      %p221 = scmp.ne.s32.totalorder %s207, %s208
      %p222 = scmp.eq.s32.totalorder %s32, 1
      %p223 = por %p221, %p222
      %p225 = scmp.ne.s32.totalorder %s208, %s224
      %p226 = scmp.eq.s32.totalorder %s32, 0
      %p227 = por %p225, %p226
      %s228 = ssub.s32 %s34, %s41
      %p229 = scmp.eq.s32.totalorder %s228, 0
      %s231 = sadd.s32 %s230, 1
      %s232 = scalar_select %p229, %s230, %s231
      %p235 = pneg %p229
      %p236 = scmp.eq.s32.totalorder %s26, 1
      %p237 = por %p235, %p236
      %p238 = scmp.ne.s32.totalorder %s230, %s233
      %p239 = scmp.eq.s32.totalorder %s26, 0
      %p240 = por %p238, %p239
      %p241 = scmp.ne.s32.totalorder %s230, %s233
      %p242 = scmp.eq.s32.totalorder %s31, 1
      %p243 = por %p241, %p242
      %p244 = scmp.ne.s32.totalorder %s233, %s234
      %p245 = scmp.eq.s32.totalorder %s31, 0
      %p246 = por %p244, %p245
      %p247 = scmp.ne.s32.totalorder %s233, %s234
      %p248 = scmp.eq.s32.totalorder %s32, 1
      %p249 = por %p247, %p248
      %p251 = scmp.ne.s32.totalorder %s234, %s250
      %p252 = scmp.eq.s32.totalorder %s32, 0
      %p253 = por %p251, %p252
      %s254 = ssub.s32 %s34, %s41
      %p255 = scmp.eq.s32.totalorder %s254, 0
      %s257 = sadd.s32 %s256, 1
      %s258 = scalar_select %p255, %s256, %s257
      %p261 = pneg %p255
      %p262 = scmp.eq.s32.totalorder %s26, 1
      %p263 = por %p261, %p262
      %p264 = scmp.ne.s32.totalorder %s256, %s259
      %p265 = scmp.eq.s32.totalorder %s26, 0
      %p266 = por %p264, %p265
      %p267 = scmp.ne.s32.totalorder %s256, %s259
      %p268 = scmp.eq.s32.totalorder %s31, 1
      %p269 = por %p267, %p268
      %p270 = scmp.ne.s32.totalorder %s259, %s260
      %p271 = scmp.eq.s32.totalorder %s31, 0
      %p272 = por %p270, %p271
      %p273 = scmp.ne.s32.totalorder %s259, %s260
      %p274 = scmp.eq.s32.totalorder %s32, 1
      %p275 = por %p273, %p274
      %p277 = scmp.ne.s32.totalorder %s260, %s276
      %p278 = scmp.eq.s32.totalorder %s32, 0
      %p279 = por %p277, %p278
      %s280 = ssub.s32 %s34, %s41
      %p281 = scmp.eq.s32.totalorder %s280, 0
      %s283 = sadd.s32 %s282, 1
      %s284 = scalar_select %p281, %s282, %s283
      %p287 = pneg %p281
      %p288 = scmp.eq.s32.totalorder %s26, 1
      %p289 = por %p287, %p288
      %p290 = scmp.ne.s32.totalorder %s282, %s285
      %p291 = scmp.eq.s32.totalorder %s26, 0
      %p292 = por %p290, %p291
      %p293 = scmp.ne.s32.totalorder %s282, %s285
      %p294 = scmp.eq.s32.totalorder %s31, 1
      %p295 = por %p293, %p294
      %p296 = scmp.ne.s32.totalorder %s285, %s286
      %p297 = scmp.eq.s32.totalorder %s31, 0
      %p298 = por %p296, %p297
      %p299 = scmp.ne.s32.totalorder %s285, %s286
      %p300 = scmp.eq.s32.totalorder %s32, 1
      %p301 = por %p299, %p300
      %p303 = scmp.ne.s32.totalorder %s286, %s302
      %p304 = scmp.eq.s32.totalorder %s32, 0
      %p305 = por %p303, %p304
      %s306 = ssub.s32 %s34, %s41
      %p307 = scmp.eq.s32.totalorder %s306, 0
      %s309 = sadd.s32 %s308, 1
      %s310 = scalar_select %p307, %s308, %s309
      %p313 = pneg %p307
      %p314 = scmp.eq.s32.totalorder %s26, 1
      %p315 = por %p313, %p314
      %p316 = scmp.ne.s32.totalorder %s308, %s311
      %p317 = scmp.eq.s32.totalorder %s26, 0
      %p318 = por %p316, %p317
      %p319 = scmp.ne.s32.totalorder %s308, %s311
      %p320 = scmp.eq.s32.totalorder %s31, 1
      %p321 = por %p319, %p320
      %p322 = scmp.ne.s32.totalorder %s311, %s312
      %p323 = scmp.eq.s32.totalorder %s31, 0
      %p324 = por %p322, %p323
      %p325 = scmp.ne.s32.totalorder %s311, %s312
      %p326 = scmp.eq.s32.totalorder %s32, 1
      %p327 = por %p325, %p326
      %p329 = scmp.ne.s32.totalorder %s312, %s328
      %p330 = scmp.eq.s32.totalorder %s32, 0
      %p331 = por %p329, %p330
      %s332 = ssub.s32 %s34, %s41
      %p333 = scmp.eq.s32.totalorder %s332, 0
      %s335 = sadd.s32 %s334, 1
      %s336 = scalar_select %p333, %s334, %s335
      %p339 = pneg %p333
      %p340 = scmp.eq.s32.totalorder %s26, 1
      %p341 = por %p339, %p340
      %p342 = scmp.ne.s32.totalorder %s334, %s337
      %p343 = scmp.eq.s32.totalorder %s26, 0
      %p344 = por %p342, %p343
      %p345 = scmp.ne.s32.totalorder %s334, %s337
      %p346 = scmp.eq.s32.totalorder %s31, 1
      %p347 = por %p345, %p346
      %p348 = scmp.ne.s32.totalorder %s337, %s338
      %p349 = scmp.eq.s32.totalorder %s31, 0
      %p350 = por %p348, %p349
      %p351 = scmp.ne.s32.totalorder %s337, %s338
      %p352 = scmp.eq.s32.totalorder %s32, 1
      %p353 = por %p351, %p352
      %p355 = scmp.ne.s32.totalorder %s338, %s354
      %p356 = scmp.eq.s32.totalorder %s32, 0
      %p357 = por %p355, %p356
      %s358 = ssub.s32 %s33, %s45
      %p359 = scmp.eq.s32.totalorder %s358, 0
      %s361 = sadd.s32 %s360, 1
      %s362 = scalar_select %p359, %s360, %s361
      %p365 = pneg %p359
      %p366 = scmp.eq.s32.totalorder %s26, 1
      %p367 = por %p365, %p366
      %p368 = scmp.ne.s32.totalorder %s360, %s363
      %p369 = scmp.eq.s32.totalorder %s26, 0
      %p370 = por %p368, %p369
      %p371 = scmp.ne.s32.totalorder %s360, %s363
      %p372 = scmp.eq.s32.totalorder %s31, 1
      %p373 = por %p371, %p372
      %p374 = scmp.ne.s32.totalorder %s363, %s364
      %p375 = scmp.eq.s32.totalorder %s31, 0
      %p376 = por %p374, %p375
      %p377 = scmp.ne.s32.totalorder %s363, %s364
      %p378 = scmp.eq.s32.totalorder %s32, 1
      %p379 = por %p377, %p378
      %p381 = scmp.ne.s32.totalorder %s364, %s380
      %p382 = scmp.eq.s32.totalorder %s32, 0
      %p383 = por %p381, %p382
      %p384 = scmp.le.s32.totalorder 1, %s26
      %p385 = scmp.lt.s32.totalorder %s26, 3
      %p386 = pnand %p384, %p385
      %p387 = pneg %p386
      // Predicated region
      $region9: #{tpu_custom_call.1} parent=5 // pred_check
        _
      $region10: #{tpu_custom_call.1} parent=5 // pred_check_branch
        %389 = sbr.rel (%p386) target = $region12
      $region11: #{tpu_custom_call.1} parent=5 // pred_region
        %s390 = ssub.s32 %s26, 1
        // Predicated region
        $region13: #{tpu_custom_call.1} parent=11 // pred_check
          %p391 = pneg %p64
        $region14: #{tpu_custom_call.1} parent=11 // pred_check_branch
          %393 = sbr.rel (%p391) target = $region16
        $region15: #{tpu_custom_call.1} parent=11 // pred_region
          %s394 = smul.u32 2, %s35
          %396 = vsyncadd [#allocation5], 0
          %s397 = smul.addr %s394, 8
          %s398 = scalar_lea.hbm %s0, %s397
          %s399 = sshll.u32 %s398, 4
          %s400 = int_to_ptr.hbm [resolvable:$true] %s399
          %s401 = sshll.u32 [#allocation4], 4
          %s402 = int_to_ptr.vmem [resolvable:$true] %s401
          %407 = dma.hbm_to_vmem [thread:$0]  %s400, 256, %s402, [#allocation5], 128, 128, 8
        $region16: #{tpu_custom_call.1} parent=11 // pred_fallthru
          _
      $region12: #{tpu_custom_call.1} parent=5 // pred_fallthru
        _
      %p408 = scmp.lt.s32.totalorder %s26, 2
      // Predicated region
      $region17: #{tpu_custom_call.1} parent=5 // pred_check
        %p409 = pneg %p408
      $region18: #{tpu_custom_call.1} parent=5 // pred_check_branch
        %411 = sbr.rel (%p409) target = $region20
      $region19: #{tpu_custom_call.1} parent=5 // pred_region
        // Predicated region
        $region21: #{tpu_custom_call.1} parent=19 // pred_check
          %p412 = pneg %p84
        $region22: #{tpu_custom_call.1} parent=19 // pred_check_branch
          %414 = sbr.rel (%p412) target = $region24
        $region23: #{tpu_custom_call.1} parent=19 // pred_region
          %s415 = sand.u32 %s26, 1
          %s416 = scalar_lea.sflag [#allocation8], %s415
          %s417 = sand.u32 %s74, 1
          %s418 = scalar_lea.vmem [#allocation7], %s417
          %420 = vsyncadd %s416, 0
          %s421 = scalar_lea.hbm %s1, %s34
          %s423 = sshll.u32 %s421, 4
          %s424 = int_to_ptr.hbm [resolvable:$true] %s423
          %s425 = sshll.u32 %s418, 4
          %s426 = int_to_ptr.vmem [resolvable:$true] %s425
          %428 = dma.hbm_to_vmem [thread:$0]  %s424, 16, %s426, %s416
        $region24: #{tpu_custom_call.1} parent=19 // pred_fallthru
          _
        // Predicated region
        $region25: #{tpu_custom_call.1} parent=19 // pred_check
          %p429 = pneg %p110
        $region26: #{tpu_custom_call.1} parent=19 // pred_check_branch
          %431 = sbr.rel (%p429) target = $region28
        $region27: #{tpu_custom_call.1} parent=19 // pred_region
          %s432 = sand.u32 %s26, 1
          %s433 = scalar_lea.sflag [#allocation8], %s432
          %s434 = sand.u32 %s100, 1
          %s435 = scalar_lea.vmem [#allocation9], %s434
          %437 = vsyncadd %s433, 0
          %s438 = scalar_lea.hbm %s2, %s34
          %s440 = sshll.u32 %s438, 4
          %s441 = int_to_ptr.hbm [resolvable:$true] %s440
          %s442 = sshll.u32 %s435, 4
          %s443 = int_to_ptr.vmem [resolvable:$true] %s442
          %445 = dma.hbm_to_vmem [thread:$0]  %s441, 16, %s443, %s433
        $region28: #{tpu_custom_call.1} parent=19 // pred_fallthru
          _
        // Predicated region
        $region29: #{tpu_custom_call.1} parent=19 // pred_check
          %p446 = pneg %p136
        $region30: #{tpu_custom_call.1} parent=19 // pred_check_branch
          %448 = sbr.rel (%p446) target = $region32
        $region31: #{tpu_custom_call.1} parent=19 // pred_region
          %p449 = scmp.lt.s32.totalorder %s34, 1
          %s450 = scalar_select %p449, %s34, 1
          %s451 = smul.addr %s450, 4
          %s452 = smul.addr %s451, 4
          %s453 = scalar_lea.vmem %s3, %s452
        $region32: #{tpu_custom_call.1} parent=19 // pred_fallthru
          _
        // Predicated region
        $region33: #{tpu_custom_call.1} parent=19 // pred_check
          %p454 = pneg %p162
        $region34: #{tpu_custom_call.1} parent=19 // pred_check_branch
          %456 = sbr.rel (%p454) target = $region36
        $region35: #{tpu_custom_call.1} parent=19 // pred_region
          %p457 = scmp.lt.s32.totalorder %s34, 1
          %s458 = scalar_select %p457, %s34, 1
          %s459 = smul.addr %s458, 4
          %s460 = smul.addr %s459, 4
          %s461 = scalar_lea.vmem %s4, %s460
        $region36: #{tpu_custom_call.1} parent=19 // pred_fallthru
          _
        // Predicated region
        $region37: #{tpu_custom_call.1} parent=19 // pred_check
          %p462 = pneg %p188
        $region38: #{tpu_custom_call.1} parent=19 // pred_check_branch
          %464 = sbr.rel (%p462) target = $region40
        $region39: #{tpu_custom_call.1} parent=19 // pred_region
          %p465 = scmp.lt.s32.totalorder %s34, 1
          %s466 = scalar_select %p465, %s34, 1
          %s467 = scalar_lea.vmem %s5, %s466
        $region40: #{tpu_custom_call.1} parent=19 // pred_fallthru
          _
        // Predicated region
        $region41: #{tpu_custom_call.1} parent=19 // pred_check
          %p468 = pneg %p214
        $region42: #{tpu_custom_call.1} parent=19 // pred_check_branch
          %470 = sbr.rel (%p468) target = $region44
        $region43: #{tpu_custom_call.1} parent=19 // pred_region
          %p471 = scmp.lt.s32.totalorder %s34, 1
          %s472 = scalar_select %p471, %s34, 1
          %s473 = scalar_lea.vmem %s6, %s472
        $region44: #{tpu_custom_call.1} parent=19 // pred_fallthru
          _
        // Predicated region
        $region45: #{tpu_custom_call.1} parent=19 // pred_check
          %p474 = pneg %p240
        $region46: #{tpu_custom_call.1} parent=19 // pred_check_branch
          %476 = sbr.rel (%p474) target = $region48
        $region47: #{tpu_custom_call.1} parent=19 // pred_region
          %s477 = sand.u32 %s230, 1
          %s478 = scalar_lea.sflag [#allocation11], %s477
          %s479 = sand.u32 %s230, 1
          %s480 = scalar_lea.vmem [#allocation10], %s479
          %482 = vsyncadd %s478, 0
          %s483 = scalar_lea.hbm %s7, %s34
          %s485 = sshll.u32 %s483, 4
          %s486 = int_to_ptr.hbm [resolvable:$true] %s485
          %s487 = sshll.u32 %s480, 4
          %s488 = int_to_ptr.vmem [resolvable:$true] %s487
          %490 = dma.hbm_to_vmem [thread:$0]  %s486, 16, %s488, %s478
        $region48: #{tpu_custom_call.1} parent=19 // pred_fallthru
          _
        // Predicated region
        $region49: #{tpu_custom_call.1} parent=19 // pred_check
          %p491 = pneg %p266
        $region50: #{tpu_custom_call.1} parent=19 // pred_check_branch
          %493 = sbr.rel (%p491) target = $region52
        $region51: #{tpu_custom_call.1} parent=19 // pred_region
          %p494 = scmp.lt.s32.totalorder %s34, 1
          %s495 = scalar_select %p494, %s34, 1
          %s496 = smul.addr %s495, 4
          %s497 = smul.addr %s496, 4
          %s498 = scalar_lea.vmem %s8, %s497
        $region52: #{tpu_custom_call.1} parent=19 // pred_fallthru
          _
        // Predicated region
        $region53: #{tpu_custom_call.1} parent=19 // pred_check
          %p499 = pneg %p292
        $region54: #{tpu_custom_call.1} parent=19 // pred_check_branch
          %501 = sbr.rel (%p499) target = $region56
        $region55: #{tpu_custom_call.1} parent=19 // pred_region
          %p502 = scmp.lt.s32.totalorder %s34, 1
          %s503 = scalar_select %p502, %s34, 1
          %s504 = scalar_lea.vmem %s9, %s503
        $region56: #{tpu_custom_call.1} parent=19 // pred_fallthru
          _
        // Predicated region
        $region57: #{tpu_custom_call.1} parent=19 // pred_check
          %p505 = pneg %p318
        $region58: #{tpu_custom_call.1} parent=19 // pred_check_branch
          %507 = sbr.rel (%p505) target = $region60
        $region59: #{tpu_custom_call.1} parent=19 // pred_region
          %p508 = scmp.lt.s32.totalorder %s34, 1
          %s509 = scalar_select %p508, %s34, 1
          %s510 = smul.addr %s509, 8
          %s511 = smul.addr %s510, 4
          %s512 = scalar_lea.vmem %s10, %s511
        $region60: #{tpu_custom_call.1} parent=19 // pred_fallthru
          _
        // Predicated region
        $region61: #{tpu_custom_call.1} parent=19 // pred_check
          %p513 = pneg %p344
        $region62: #{tpu_custom_call.1} parent=19 // pred_check_branch
          %515 = sbr.rel (%p513) target = $region64
        $region63: #{tpu_custom_call.1} parent=19 // pred_region
          %p516 = scmp.lt.s32.totalorder %s34, 1
          %s517 = scalar_select %p516, %s34, 1
          %s518 = scalar_lea.vmem %s11, %s517
        $region64: #{tpu_custom_call.1} parent=19 // pred_fallthru
          _
      $region20: #{tpu_custom_call.1} parent=5 // pred_fallthru
        _
      %p519 = scmp.le.s32.totalorder 1, %s26
      %p520 = scmp.lt.s32.totalorder %s26, 3
      %p521 = pnand %p519, %p520
      %p522 = pneg %p521
      // Predicated region
      $region65: #{tpu_custom_call.1} parent=5 // pred_check
        _
      $region66: #{tpu_custom_call.1} parent=5 // pred_check_branch
        %524 = sbr.rel (%p521) target = $region68
      $region67: #{tpu_custom_call.1} parent=5 // pred_region
        %s525 = ssub.s32 %s26, 1
        // Predicated region
        $region69: #{tpu_custom_call.1} parent=67 // pred_check
          %p526 = pneg %p64
        $region70: #{tpu_custom_call.1} parent=67 // pred_check_branch
          %528 = sbr.rel (%p526) target = $region72
        $region71: #{tpu_custom_call.1} parent=67 // pred_region
          %530 = dma.done [#allocation5], 256
        $region72: #{tpu_custom_call.1} parent=67 // pred_fallthru
          _
        %s531 = sand.u32 %s31, 1
        %s532 = scalar_lea.sflag [#allocation8], %s531
        %s533 = sand.u32 %s77, 1
        %s534 = scalar_lea.vmem [#allocation7], %s533
        // Predicated region
        $region73: #{tpu_custom_call.1} parent=67 // pred_check
          %p535 = pneg %p90
        $region74: #{tpu_custom_call.1} parent=67 // pred_check_branch
          %537 = sbr.rel (%p535) target = $region76
        $region75: #{tpu_custom_call.1} parent=67 // pred_region
          %539 = dma.done %s532, 16
        $region76: #{tpu_custom_call.1} parent=67 // pred_fallthru
          _
        %s540 = sand.u32 %s31, 1
        %s541 = scalar_lea.sflag [#allocation8], %s540
        %s542 = sand.u32 %s103, 1
        %s543 = scalar_lea.vmem [#allocation9], %s542
        // Predicated region
        $region77: #{tpu_custom_call.1} parent=67 // pred_check
          %p544 = pneg %p116
        $region78: #{tpu_custom_call.1} parent=67 // pred_check_branch
          %546 = sbr.rel (%p544) target = $region80
        $region79: #{tpu_custom_call.1} parent=67 // pred_region
          %548 = dma.done %s541, 16
        $region80: #{tpu_custom_call.1} parent=67 // pred_fallthru
          _
        %s549 = sand.u32 %s233, 1
        %s550 = scalar_lea.sflag [#allocation11], %s549
        %s551 = sand.u32 %s233, 1
        %s552 = scalar_lea.vmem [#allocation10], %s551
        // Predicated region
        $region81: #{tpu_custom_call.1} parent=67 // pred_check
          %p553 = pneg %p246
        $region82: #{tpu_custom_call.1} parent=67 // pred_check_branch
          %555 = sbr.rel (%p553) target = $region84
        $region83: #{tpu_custom_call.1} parent=67 // pred_region
          %557 = dma.done %s550, 16
        $region84: #{tpu_custom_call.1} parent=67 // pred_fallthru
          _
        %p558 = pneg %p64
        %p559 = pneg %p61
        %s560 = sand.u32 %s31, 1
        %s561 = scalar_lea.sflag [#allocation8], %s560
        %s562 = sand.u32 %s77, 1
        %s563 = scalar_lea.vmem [#allocation7], %s562
        %p564 = pneg %p90
        %p565 = pneg %p87
        %s566 = sand.u32 %s31, 1
        %s567 = scalar_lea.sflag [#allocation8], %s566
        %s568 = sand.u32 %s103, 1
        %s569 = scalar_lea.vmem [#allocation9], %s568
        %p570 = pneg %p116
        %p571 = pneg %p113
        %p572 = scmp.lt.s32.totalorder %s36, 1
        %s573 = scalar_select %p572, %s36, 1
        %s574 = smul.addr %s573, 4
        %s575 = smul.addr %s574, 4
        %s576 = scalar_lea.vmem %s3, %s575
        %p577 = pneg %p142
        %p578 = pneg %p139
        %p579 = scmp.lt.s32.totalorder %s36, 1
        %s580 = scalar_select %p579, %s36, 1
        %s581 = smul.addr %s580, 4
        %s582 = smul.addr %s581, 4
        %s583 = scalar_lea.vmem %s4, %s582
        %p584 = pneg %p168
        %p585 = pneg %p165
        %p586 = scmp.lt.s32.totalorder %s36, 1
        %s587 = scalar_select %p586, %s36, 1
        %s588 = scalar_lea.vmem %s5, %s587
        %p589 = pneg %p194
        %p590 = pneg %p191
        %p591 = scmp.lt.s32.totalorder %s36, 1
        %s592 = scalar_select %p591, %s36, 1
        %s593 = scalar_lea.vmem %s6, %s592
        %p594 = pneg %p220
        %p595 = pneg %p217
        %s596 = sand.u32 %s233, 1
        %s597 = scalar_lea.sflag [#allocation11], %s596
        %s598 = sand.u32 %s233, 1
        %s599 = scalar_lea.vmem [#allocation10], %s598
        %p600 = pneg %p246
        %p601 = pneg %p243
        %p602 = scmp.lt.s32.totalorder %s36, 1
        %s603 = scalar_select %p602, %s36, 1
        %s604 = smul.addr %s603, 4
        %s605 = smul.addr %s604, 4
        %s606 = scalar_lea.vmem %s8, %s605
        %p607 = pneg %p272
        %p608 = pneg %p269
        %p609 = scmp.lt.s32.totalorder %s36, 1
        %s610 = scalar_select %p609, %s36, 1
        %s611 = scalar_lea.vmem %s9, %s610
        %p612 = pneg %p298
        %p613 = pneg %p295
        %p614 = scmp.lt.s32.totalorder %s36, 1
        %s615 = scalar_select %p614, %s36, 1
        %s616 = smul.addr %s615, 8
        %s617 = smul.addr %s616, 4
        %s618 = scalar_lea.vmem %s10, %s617
        %p619 = pneg %p324
        %p620 = pneg %p321
        %p621 = scmp.lt.s32.totalorder %s36, 1
        %s622 = scalar_select %p621, %s36, 1
        %s623 = scalar_lea.vmem %s11, %s622
        %p624 = pneg %p350
        %p625 = pneg %p347
        %p626 = pneg %p376
        %p627 = pneg %p373
        %s628 = smul.u32 2, %s35
        %p629 = scmp.lt.s32.totalorder %s36, 1
        %s630 = scalar_select %p629, %s36, 1
        %s631 = smul.addr %s630, 4
        %s632 = smul.addr %s631, 4
        %s633 = scalar_lea.vmem %s3, %s632
        %p634 = scmp.lt.s32.totalorder %s36, 1
        %s635 = scalar_select %p634, %s36, 1
        %s636 = smul.addr %s635, 4
        %s637 = smul.addr %s636, 4
        %s638 = scalar_lea.vmem %s4, %s637
        %p639 = scmp.lt.s32.totalorder %s36, 1
        %s640 = scalar_select %p639, %s36, 1
        %s641 = scalar_lea.vmem %s5, %s640
        %p642 = scmp.lt.s32.totalorder %s36, 1
        %s643 = scalar_select %p642, %s36, 1
        %s644 = scalar_lea.vmem %s6, %s643
        %p645 = scmp.lt.s32.totalorder %s36, 1
        %s646 = scalar_select %p645, %s36, 1
        %s647 = smul.addr %s646, 4
        %s648 = smul.addr %s647, 4
        %s649 = scalar_lea.vmem %s8, %s648
        %p650 = scmp.lt.s32.totalorder %s36, 1
        %s651 = scalar_select %p650, %s36, 1
        %s652 = scalar_lea.vmem %s9, %s651
        %p653 = scmp.lt.s32.totalorder %s36, 1
        %s654 = scalar_select %p653, %s36, 1
        %s655 = smul.addr %s654, 8
        %s656 = smul.addr %s655, 4
        %s657 = scalar_lea.vmem %s10, %s656
        %p658 = scmp.lt.s32.totalorder %s36, 1
        %s659 = scalar_select %p658, %s36, 1
        %s660 = scalar_lea.vmem %s11, %s659
        %s661 = smul.u32 2, %s35
        %p663 = scmp.eq.s32.totalorder %s36, 0
        // Predicated region
        $region85: #{tpu_custom_call.1} parent=67 // pred_check
          %p664 = pneg %p663
        $region86: #{tpu_custom_call.1} parent=67 // pred_check_branch
          %666 = sbr.rel (%p664) target = $region88
        $region87: #{tpu_custom_call.1} parent=67 // pred_region
          %v667 = vld [vmem:[#allocation4] sm:$0xff]
          %v668 = vld [vmem:[#allocation4 + $0x8] sm:$0xff]
          %vm669 = vcmask 261120
          %670 = vst.msk [vmem:[#allocation2] sm:$0xff] %vm669, %v667
          %671 = vst.msk [vmem:[#allocation2 + $0x8] sm:$0xff] %vm669, %v668
        $region88: #{tpu_custom_call.1} parent=67 // pred_fallthru
          _
        %v672 = vld [vmem:[#allocation2] sm:$0xff]
        %v673 = vld [vmem:[#allocation2 + $0x8] sm:$0xff]
        %v674 = vld [vmem:[%s534] sm:$0x1]
        %v675 = vld [vmem:[%s543] sm:$0x1]
        %vm676 = vcmask 261120
        %v677 = vsel %vm676, %v672, 0.0
        %678 = vadd.xlane.f32.xlu0 %v677
        %v679 = vpop.xlane.xlu0 %678
        %v680 = vsel %vm676, %v673, 0.0
        %681 = vadd.xlane.f32.xlu0 %v680
        %v682 = vpop.xlane.xlu0 %681
        %v683 = vrcp.pop 32.0
        %v684 = vmul.f32 32.0, %v683
        %v685 = vsub.f32 1.0, %v684
        %v686 = vmul.f32 %v683, %v685
        %v687 = vadd.f32 %v683, %v686
        %vm688 = vweird.f32 %v683
        %v689 = vsel %vm688, %v683, %v687
        %v690 = vmul.f32 %v679, %v689
        %v691 = vmul.f32 %v682, %v689
        %v692 = vsub.f32 %v672, %v690
        %v693 = vsub.f32 %v673, %v691
        %v694 = vmul.f32 %v692, %v692
        %v695 = vmul.f32 %v693, %v693
        %v696 = vsel %vm676, %v694, 0.0
        %697 = vadd.xlane.f32.xlu0 %v696
        %v698 = vpop.xlane.xlu0 %697
        %v699 = vsel %vm676, %v695, 0.0
        %700 = vadd.xlane.f32.xlu0 %v699
        %v701 = vpop.xlane.xlu0 %700
        %v702 = vmul.f32 %v698, %v689
        %v703 = vmul.f32 %v701, %v689
        %v704 = vadd.f32 %v702, 1e-05
        %v705 = vadd.f32 %v703, 1e-05
        %v706 = vrsqrt.pop %v704
        %v707 = vmul.f32 %v706, %v704
        %v708 = vmul.f32 %v707, %v706
        %v709 = vmul.f32 0.5, %v708
        %v710 = vsub.f32 1.5, %v709
        %v711 = vmul.f32 %v706, %v710
        %vm712 = vweird.f32 %v704
        %vm713 = vweird.f32 %v706
        %vm714 = vmor %vm712, %vm713
        %v715 = vsel %vm714, %v706, %v711
        %v716 = vrsqrt.pop %v705
        %v717 = vmul.f32 %v716, %v705
        %v718 = vmul.f32 %v717, %v716
        %v719 = vmul.f32 0.5, %v718
        %v720 = vsub.f32 1.5, %v719
        %v721 = vmul.f32 %v716, %v720
        %vm722 = vweird.f32 %v705
        %vm723 = vweird.f32 %v716
        %vm724 = vmor %vm722, %vm723
        %v725 = vsel %vm724, %v716, %v721
        %v726 = vmul.f32 %v692, %v715
        %v727 = vmul.f32 %v693, %v725
        %v729 = vperm.slane %v674, 0
        %v731 = vmul.f32 %v726, %v729
        %v732 = vmul.f32 %v727, %v729
        %v734 = vperm.slane %v675, 0
        %v736 = vadd.f32 %v731, %v734
        %v737 = vadd.f32 %v732, %v734
        %v738 = vpack.c.bf16 %v737, %v736
        %v739 = vld [vmem:[%s633] sm:$0xf]
        %v740 = vld [vmem:[%s633 + $0x4] sm:$0xf]
        %v741 = vld [vmem:[%s633 + $0x8] sm:$0xf]
        %v742 = vld [vmem:[%s633 + $0xc] sm:$0xf]
        %v747 = vunpack.c.l.b16 %v739
        %v748 = vunpack.c.l.b16 %v740
        %v749 = vunpack.c.l.b16 %v741
        %v750 = vunpack.c.l.b16 %v742
        %v751 = vpack.c.b16 %v748, %v747
        %v752 = vpack.c.b16 %v750, %v749
        %v756 = vsel %vm676, %v738, 0
        %758 = vmatpush.bf16.msra.mxu0 0
        %759 = vmatpush.bf16.msra.mxu0 0
        %760 = vmatpush.bf16.msra.mxu0 0
        %761 = vmatpush.bf16.msra.mxu0 0
        %762 = vmatpush.bf16.msra.mxu0 0
        %763 = vmatpush.bf16.msra.mxu0 0
        %764 = vmatpush.bf16.msra.mxu0 %v752
        %765 = vmatpush.bf16.msra.mxu0 %v751
        %766 = vmatmul.bf16.gmra.mxu0 %v756
        %v767 = vpop.f32.mrf.mxu0
        %v768 = vadd.f32 0.0, %v767
        %v769 = vpop.f32.mrf.mxu0
        %v770 = vadd.f32 0.0, %v769
        %771 = vdwg.mxu0
        %v772 = vpack.c.bf16 %v768, %v768
        %v773 = vpack.c.bf16 %v770, %v770
        %v775 = vunpack.c.l.b16 %v772
        %v776 = vpack.c.b16 %v775, %v775
        %777 = vrot.lane.b32.xlu0 %v776, 96
        %v778 = vpop.permute.xlu0 %777
        %vm779 = vcmask 64512
        %v781 = vsel %vm779, %v772, 0
        %v784 = vsel %vm779, %v778, 0
        %786 = vmatpush.bf16.xpose.msra.mxu0 0
        %787 = vmatpush.bf16.xpose.msra.mxu0 0
        %788 = vmatpush.bf16.xpose.msra.mxu0 0
        %789 = vmatpush.bf16.xpose.msra.mxu0 0
        %790 = vmatpush.bf16.xpose.msra.mxu0 0
        %791 = vmatpush.bf16.xpose.msra.mxu0 0
        %792 = vmatpush.bf16.xpose.msra.mxu0 0
        %793 = vmatpush.bf16.xpose.msra.mxu0 %v784
        %794 = vmatmul.bf16.gmra.mxu0 %v781
        %v795 = vpop.f32.mrf.mxu0
        %v796 = vadd.f32 0.0, %v795
        %v797 = vpop.f32.mrf.mxu0
        %798 = vdwg.mxu0
        %v800 = vunpack.c.l.b16 %v773
        %v801 = vpack.c.b16 %v800, %v800
        %802 = vrot.lane.b32.xlu0 %v801, 96
        %v803 = vpop.permute.xlu0 %802
        %v805 = vsel %vm779, %v773, 0
        %v808 = vsel %vm779, %v803, 0
        %810 = vmatpush.bf16.xpose.msra.mxu0 0
        %811 = vmatpush.bf16.xpose.msra.mxu0 0
        %812 = vmatpush.bf16.xpose.msra.mxu0 0
        %813 = vmatpush.bf16.xpose.msra.mxu0 0
        %814 = vmatpush.bf16.xpose.msra.mxu0 0
        %815 = vmatpush.bf16.xpose.msra.mxu0 0
        %816 = vmatpush.bf16.xpose.msra.mxu0 0
        %817 = vmatpush.bf16.xpose.msra.mxu0 %v808
        %818 = vmatmul.bf16.gmra.mxu0 %v805
        %v819 = vpop.f32.mrf.mxu0
        %v820 = vadd.f32 0.0, %v819
        %v821 = vpop.f32.mrf.mxu0
        %822 = vdwg.mxu0
        %v823 = vsel %vm779, %v796, -inf
        %824 = vmax.xlane.f32.xlu0 %v823
        %v825 = vpop.xlane.xlu0 %824
        %v826 = vsel %vm779, %v820, -inf
        %827 = vmax.xlane.f32.xlu0 %v826
        %v828 = vpop.xlane.xlu0 %827
        %v829 = vsub.f32 %v796, %v825
        %v830 = vsub.f32 %v820, %v828
        %v831 = vmul.f32 %v829, 1.442695
        %v832 = vpow.pop %v831
        %v833 = vmul.f32 %v830, 1.442695
        %v834 = vpow.pop %v833
        %v835 = vsel %vm779, %v832, 0.0
        %836 = vadd.xlane.f32.xlu0 %v835
        %v837 = vpop.xlane.xlu0 %836
        %v838 = vsel %vm779, %v834, 0.0
        %839 = vadd.xlane.f32.xlu0 %v838
        %v840 = vpop.xlane.xlu0 %839
        %v841 = vrcp.pop %v837
        %v842 = vrcp.pop %v840
        %v843 = vmul.f32 %v832, %v841
        %v844 = vmul.f32 %v834, %v842
        %v845 = vpack.c.bf16 %v843, %v843
        %v846 = vpack.c.bf16 %v844, %v844
        %847 = vrot.lane.b32.xlu0 %v776, 64
        %v848 = vpop.permute.xlu0 %847
        %v850 = vsel %vm779, %v845, 0
        %vm852 = vcmask 1043456
        %v854 = vsel %vm852, %v848, 0
        %856 = vmatpush.bf16.msra.mxu0 0
        %857 = vmatpush.bf16.msra.mxu0 0
        %858 = vmatpush.bf16.msra.mxu0 0
        %859 = vmatpush.bf16.msra.mxu0 0
        %860 = vmatpush.bf16.msra.mxu0 0
        %861 = vmatpush.bf16.msra.mxu0 0
        %862 = vmatpush.bf16.msra.mxu0 0
        %863 = vmatpush.bf16.msra.mxu0 %v854
        %864 = vmatmul.bf16.gmra.mxu0 %v850
        %v865 = vpop.f32.mrf.mxu0
        %v866 = vadd.f32 0.0, %v865
        %v867 = vpop.f32.mrf.mxu0
        %868 = vdwg.mxu0
        %869 = vrot.lane.b32.xlu0 %v801, 64
        %v870 = vpop.permute.xlu0 %869
        %v872 = vsel %vm779, %v846, 0
        %v875 = vsel %vm852, %v870, 0
        %877 = vmatpush.bf16.msra.mxu0 0
        %878 = vmatpush.bf16.msra.mxu0 0
        %879 = vmatpush.bf16.msra.mxu0 0
        %880 = vmatpush.bf16.msra.mxu0 0
        %881 = vmatpush.bf16.msra.mxu0 0
        %882 = vmatpush.bf16.msra.mxu0 0
        %883 = vmatpush.bf16.msra.mxu0 0
        %884 = vmatpush.bf16.msra.mxu0 %v875
        %885 = vmatmul.bf16.gmra.mxu0 %v872
        %v886 = vpop.f32.mrf.mxu0
        %v887 = vadd.f32 0.0, %v886
        %v888 = vpop.f32.mrf.mxu0
        %889 = vdwg.mxu0
        %v890 = vpack.c.bf16 %v866, %v866
        %v891 = vpack.c.bf16 %v887, %v887
        %vm892 = vcmask 60416
        %893 = vst.msk [vmem:[#allocation3] sm:$0xf] %vm892, %v890
        %894 = vst.msk [vmem:[#allocation3 + $0x4] sm:$0xf] %vm892, %v891
        %895 = vrot.lane.b32.xlu0 %v776, 120
        %v896 = vpop.permute.xlu0 %895
        %897 = vrot.lane.b32.xlu0 %v776, 88
        %v898 = vpop.permute.xlu0 %897
        %v900 = vsel %vm779, %v896, 0
        %v903 = vsel %vm779, %v898, 0
        %905 = vmatpush.bf16.xpose.msra.mxu0 0
        %906 = vmatpush.bf16.xpose.msra.mxu0 0
        %907 = vmatpush.bf16.xpose.msra.mxu0 0
        %908 = vmatpush.bf16.xpose.msra.mxu0 0
        %909 = vmatpush.bf16.xpose.msra.mxu0 0
        %910 = vmatpush.bf16.xpose.msra.mxu0 0
        %911 = vmatpush.bf16.xpose.msra.mxu0 0
        %912 = vmatpush.bf16.xpose.msra.mxu0 %v903
        %913 = vmatmul.bf16.gmra.mxu0 %v900
        %v914 = vpop.f32.mrf.mxu0
        %v915 = vadd.f32 0.0, %v914
        %v916 = vpop.f32.mrf.mxu0
        %917 = vdwg.mxu0
        %918 = vrot.lane.b32.xlu0 %v801, 120
        %v919 = vpop.permute.xlu0 %918
        %920 = vrot.lane.b32.xlu0 %v801, 88
        %v921 = vpop.permute.xlu0 %920
        %v923 = vsel %vm779, %v919, 0
        %v926 = vsel %vm779, %v921, 0
        %928 = vmatpush.bf16.xpose.msra.mxu0 0
        %929 = vmatpush.bf16.xpose.msra.mxu0 0
        %930 = vmatpush.bf16.xpose.msra.mxu0 0
        %931 = vmatpush.bf16.xpose.msra.mxu0 0
        %932 = vmatpush.bf16.xpose.msra.mxu0 0
        %933 = vmatpush.bf16.xpose.msra.mxu0 0
        %934 = vmatpush.bf16.xpose.msra.mxu0 0
        %935 = vmatpush.bf16.xpose.msra.mxu0 %v926
        %936 = vmatmul.bf16.gmra.mxu0 %v923
        %v937 = vpop.f32.mrf.mxu0
        %v938 = vadd.f32 0.0, %v937
        %v939 = vpop.f32.mrf.mxu0
        %940 = vdwg.mxu0
        %v941 = vsel %vm779, %v915, -inf
        %942 = vmax.xlane.f32.xlu0 %v941
        %v943 = vpop.xlane.xlu0 %942
        %v944 = vsel %vm779, %v938, -inf
        %945 = vmax.xlane.f32.xlu0 %v944
        %v946 = vpop.xlane.xlu0 %945
        %v947 = vsub.f32 %v915, %v943
        %v948 = vsub.f32 %v938, %v946
        %v949 = vmul.f32 %v947, 1.442695
        %v950 = vpow.pop %v949
        %v951 = vmul.f32 %v948, 1.442695
        %v952 = vpow.pop %v951
        %v953 = vsel %vm779, %v950, 0.0
        %954 = vadd.xlane.f32.xlu0 %v953
        %v955 = vpop.xlane.xlu0 %954
        %v956 = vsel %vm779, %v952, 0.0
        %957 = vadd.xlane.f32.xlu0 %v956
        %v958 = vpop.xlane.xlu0 %957
        %v959 = vrcp.pop %v955
        %v960 = vrcp.pop %v958
        %v961 = vmul.f32 %v950, %v959
        %v962 = vmul.f32 %v952, %v960
        %v963 = vpack.c.bf16 %v961, %v961
        %v964 = vpack.c.bf16 %v962, %v962
        %965 = vrot.lane.b32.xlu0 %v776, 56
        %v966 = vpop.permute.xlu0 %965
        %v968 = vsel %vm779, %v963, 0
        %v971 = vsel %vm852, %v966, 0
        %973 = vmatpush.bf16.msra.mxu0 0
        %974 = vmatpush.bf16.msra.mxu0 0
        %975 = vmatpush.bf16.msra.mxu0 0
        %976 = vmatpush.bf16.msra.mxu0 0
        %977 = vmatpush.bf16.msra.mxu0 0
        %978 = vmatpush.bf16.msra.mxu0 0
        %979 = vmatpush.bf16.msra.mxu0 0
        %980 = vmatpush.bf16.msra.mxu0 %v971
        %981 = vmatmul.bf16.gmra.mxu0 %v968
        %v982 = vpop.f32.mrf.mxu0
        %v983 = vadd.f32 0.0, %v982
        %v984 = vpop.f32.mrf.mxu0
        %985 = vdwg.mxu0
        %986 = vrot.lane.b32.xlu0 %v801, 56
        %v987 = vpop.permute.xlu0 %986
        %v989 = vsel %vm779, %v964, 0
        %v992 = vsel %vm852, %v987, 0
        %994 = vmatpush.bf16.msra.mxu0 0
        %995 = vmatpush.bf16.msra.mxu0 0
        %996 = vmatpush.bf16.msra.mxu0 0
        %997 = vmatpush.bf16.msra.mxu0 0
        %998 = vmatpush.bf16.msra.mxu0 0
        %999 = vmatpush.bf16.msra.mxu0 0
        %1000 = vmatpush.bf16.msra.mxu0 0
        %1001 = vmatpush.bf16.msra.mxu0 %v992
        %1002 = vmatmul.bf16.gmra.mxu0 %v989
        %v1003 = vpop.f32.mrf.mxu0
        %v1004 = vadd.f32 0.0, %v1003
        %v1005 = vpop.f32.mrf.mxu0
        %1006 = vdwg.mxu0
        %v1007 = vpack.c.bf16 %v983, %v983
        %v1008 = vpack.c.bf16 %v1004, %v1004
        %1011 = vrot.lane.b32.xlu0 %v1007, 8
        %v1012 = vpop.permute.xlu0 %1011
        %1013 = vrot.lane.b32.xlu0 %v1008, 8
        %v1014 = vpop.permute.xlu0 %1013
        %vm1017 = vcmask 126016
        %1018 = vst.msk [vmem:[#allocation3] sm:$0xf] %vm1017, %v1012
        %1019 = vst.msk [vmem:[#allocation3 + $0x4] sm:$0xf] %vm1017, %v1014
        %1020 = vrot.lane.b32.xlu0 %v776, 112
        %v1021 = vpop.permute.xlu0 %1020
        %1022 = vrot.lane.b32.xlu0 %v776, 80
        %v1023 = vpop.permute.xlu0 %1022
        %v1025 = vsel %vm779, %v1021, 0
        %v1028 = vsel %vm779, %v1023, 0
        %1030 = vmatpush.bf16.xpose.msra.mxu0 0
        %1031 = vmatpush.bf16.xpose.msra.mxu0 0
        %1032 = vmatpush.bf16.xpose.msra.mxu0 0
        %1033 = vmatpush.bf16.xpose.msra.mxu0 0
        %1034 = vmatpush.bf16.xpose.msra.mxu0 0
        %1035 = vmatpush.bf16.xpose.msra.mxu0 0
        %1036 = vmatpush.bf16.xpose.msra.mxu0 0
        %1037 = vmatpush.bf16.xpose.msra.mxu0 %v1028
        %1038 = vmatmul.bf16.gmra.mxu0 %v1025
        %v1039 = vpop.f32.mrf.mxu0
        %v1040 = vadd.f32 0.0, %v1039
        %v1041 = vpop.f32.mrf.mxu0
        %1042 = vdwg.mxu0
        %1043 = vrot.lane.b32.xlu0 %v801, 112
        %v1044 = vpop.permute.xlu0 %1043
        %1045 = vrot.lane.b32.xlu0 %v801, 80
        %v1046 = vpop.permute.xlu0 %1045
        %v1048 = vsel %vm779, %v1044, 0
        %v1051 = vsel %vm779, %v1046, 0
        %1053 = vmatpush.bf16.xpose.msra.mxu0 0
        %1054 = vmatpush.bf16.xpose.msra.mxu0 0
        %1055 = vmatpush.bf16.xpose.msra.mxu0 0
        %1056 = vmatpush.bf16.xpose.msra.mxu0 0
        %1057 = vmatpush.bf16.xpose.msra.mxu0 0
        %1058 = vmatpush.bf16.xpose.msra.mxu0 0
        %1059 = vmatpush.bf16.xpose.msra.mxu0 0
        %1060 = vmatpush.bf16.xpose.msra.mxu0 %v1051
        %1061 = vmatmul.bf16.gmra.mxu0 %v1048
        %v1062 = vpop.f32.mrf.mxu0
        %v1063 = vadd.f32 0.0, %v1062
        %v1064 = vpop.f32.mrf.mxu0
        %1065 = vdwg.mxu0
        %v1066 = vsel %vm779, %v1040, -inf
        %1067 = vmax.xlane.f32.xlu0 %v1066
        %v1068 = vpop.xlane.xlu0 %1067
        %v1069 = vsel %vm779, %v1063, -inf
        %1070 = vmax.xlane.f32.xlu0 %v1069
        %v1071 = vpop.xlane.xlu0 %1070
        %v1072 = vsub.f32 %v1040, %v1068
        %v1073 = vsub.f32 %v1063, %v1071
        %v1074 = vmul.f32 %v1072, 1.442695
        %v1075 = vpow.pop %v1074
        %v1076 = vmul.f32 %v1073, 1.442695
        %v1077 = vpow.pop %v1076
        %v1078 = vsel %vm779, %v1075, 0.0
        %1079 = vadd.xlane.f32.xlu0 %v1078
        %v1080 = vpop.xlane.xlu0 %1079
        %v1081 = vsel %vm779, %v1077, 0.0
        %1082 = vadd.xlane.f32.xlu0 %v1081
        %v1083 = vpop.xlane.xlu0 %1082
        %v1084 = vrcp.pop %v1080
        %v1085 = vrcp.pop %v1083
        %v1086 = vmul.f32 %v1075, %v1084
        %v1087 = vmul.f32 %v1077, %v1085
        %v1088 = vpack.c.bf16 %v1086, %v1086
        %v1089 = vpack.c.bf16 %v1087, %v1087
        %1090 = vrot.lane.b32.xlu0 %v776, 48
        %v1091 = vpop.permute.xlu0 %1090
        %v1093 = vsel %vm779, %v1088, 0
        %v1096 = vsel %vm852, %v1091, 0
        %1098 = vmatpush.bf16.msra.mxu0 0
        %1099 = vmatpush.bf16.msra.mxu0 0
        %1100 = vmatpush.bf16.msra.mxu0 0
        %1101 = vmatpush.bf16.msra.mxu0 0
        %1102 = vmatpush.bf16.msra.mxu0 0
        %1103 = vmatpush.bf16.msra.mxu0 0
        %1104 = vmatpush.bf16.msra.mxu0 0
        %1105 = vmatpush.bf16.msra.mxu0 %v1096
        %1106 = vmatmul.bf16.gmra.mxu0 %v1093
        %v1107 = vpop.f32.mrf.mxu0
        %v1108 = vadd.f32 0.0, %v1107
        %v1109 = vpop.f32.mrf.mxu0
        %1110 = vdwg.mxu0
        %1111 = vrot.lane.b32.xlu0 %v801, 48
        %v1112 = vpop.permute.xlu0 %1111
        %v1114 = vsel %vm779, %v1089, 0
        %v1117 = vsel %vm852, %v1112, 0
        %1119 = vmatpush.bf16.msra.mxu0 0
        %1120 = vmatpush.bf16.msra.mxu0 0
        %1121 = vmatpush.bf16.msra.mxu0 0
        %1122 = vmatpush.bf16.msra.mxu0 0
        %1123 = vmatpush.bf16.msra.mxu0 0
        %1124 = vmatpush.bf16.msra.mxu0 0
        %1125 = vmatpush.bf16.msra.mxu0 0
        %1126 = vmatpush.bf16.msra.mxu0 %v1117
        %1127 = vmatmul.bf16.gmra.mxu0 %v1114
        %v1128 = vpop.f32.mrf.mxu0
        %v1129 = vadd.f32 0.0, %v1128
        %v1130 = vpop.f32.mrf.mxu0
        %1131 = vdwg.mxu0
        %v1132 = vpack.c.bf16 %v1108, %v1108
        %v1133 = vpack.c.bf16 %v1129, %v1129
        %1136 = vrot.lane.b32.xlu0 %v1132, 16
        %v1137 = vpop.permute.xlu0 %1136
        %1138 = vrot.lane.b32.xlu0 %v1133, 16
        %v1139 = vpop.permute.xlu0 %1138
        %vm1142 = vcmask 191616
        %1143 = vst.msk [vmem:[#allocation3] sm:$0xf] %vm1142, %v1137
        %1144 = vst.msk [vmem:[#allocation3 + $0x4] sm:$0xf] %vm1142, %v1139
        %1145 = vrot.lane.b32.xlu0 %v776, 104
        %v1146 = vpop.permute.xlu0 %1145
        %1147 = vrot.lane.b32.xlu0 %v776, 72
        %v1148 = vpop.permute.xlu0 %1147
        %v1150 = vsel %vm779, %v1146, 0
        %v1153 = vsel %vm779, %v1148, 0
        %1155 = vmatpush.bf16.xpose.msra.mxu0 0
        %1156 = vmatpush.bf16.xpose.msra.mxu0 0
        %1157 = vmatpush.bf16.xpose.msra.mxu0 0
        %1158 = vmatpush.bf16.xpose.msra.mxu0 0
        %1159 = vmatpush.bf16.xpose.msra.mxu0 0
        %1160 = vmatpush.bf16.xpose.msra.mxu0 0
        %1161 = vmatpush.bf16.xpose.msra.mxu0 0
        %1162 = vmatpush.bf16.xpose.msra.mxu0 %v1153
        %1163 = vmatmul.bf16.gmra.mxu0 %v1150
        %v1164 = vpop.f32.mrf.mxu0
        %v1165 = vadd.f32 0.0, %v1164
        %v1166 = vpop.f32.mrf.mxu0
        %1167 = vdwg.mxu0
        %1168 = vrot.lane.b32.xlu0 %v801, 104
        %v1169 = vpop.permute.xlu0 %1168
        %1170 = vrot.lane.b32.xlu0 %v801, 72
        %v1171 = vpop.permute.xlu0 %1170
        %v1173 = vsel %vm779, %v1169, 0
        %v1176 = vsel %vm779, %v1171, 0
        %1178 = vmatpush.bf16.xpose.msra.mxu0 0
        %1179 = vmatpush.bf16.xpose.msra.mxu0 0
        %1180 = vmatpush.bf16.xpose.msra.mxu0 0
        %1181 = vmatpush.bf16.xpose.msra.mxu0 0
        %1182 = vmatpush.bf16.xpose.msra.mxu0 0
        %1183 = vmatpush.bf16.xpose.msra.mxu0 0
        %1184 = vmatpush.bf16.xpose.msra.mxu0 0
        %1185 = vmatpush.bf16.xpose.msra.mxu0 %v1176
        %1186 = vmatmul.bf16.gmra.mxu0 %v1173
        %v1187 = vpop.f32.mrf.mxu0
        %v1188 = vadd.f32 0.0, %v1187
        %v1189 = vpop.f32.mrf.mxu0
        %1190 = vdwg.mxu0
        %v1191 = vsel %vm779, %v1165, -inf
        %1192 = vmax.xlane.f32.xlu0 %v1191
        %v1193 = vpop.xlane.xlu0 %1192
        %v1194 = vsel %vm779, %v1188, -inf
        %1195 = vmax.xlane.f32.xlu0 %v1194
        %v1196 = vpop.xlane.xlu0 %1195
        %v1197 = vsub.f32 %v1165, %v1193
        %v1198 = vsub.f32 %v1188, %v1196
        %v1199 = vmul.f32 %v1197, 1.442695
        %v1200 = vpow.pop %v1199
        %v1201 = vmul.f32 %v1198, 1.442695
        %v1202 = vpow.pop %v1201
        %v1203 = vsel %vm779, %v1200, 0.0
        %1204 = vadd.xlane.f32.xlu0 %v1203
        %v1205 = vpop.xlane.xlu0 %1204
        %v1206 = vsel %vm779, %v1202, 0.0
        %1207 = vadd.xlane.f32.xlu0 %v1206
        %v1208 = vpop.xlane.xlu0 %1207
        %v1209 = vrcp.pop %v1205
        %v1210 = vrcp.pop %v1208
        %v1211 = vmul.f32 %v1200, %v1209
        %v1212 = vmul.f32 %v1202, %v1210
        %v1213 = vpack.c.bf16 %v1211, %v1211
        %v1214 = vpack.c.bf16 %v1212, %v1212
        %1215 = vrot.lane.b32.xlu0 %v776, 40
        %v1216 = vpop.permute.xlu0 %1215
        %v1218 = vsel %vm779, %v1213, 0
        %v1221 = vsel %vm852, %v1216, 0
        %1223 = vmatpush.bf16.msra.mxu0 0
        %1224 = vmatpush.bf16.msra.mxu0 0
        %1225 = vmatpush.bf16.msra.mxu0 0
        %1226 = vmatpush.bf16.msra.mxu0 0
        %1227 = vmatpush.bf16.msra.mxu0 0
        %1228 = vmatpush.bf16.msra.mxu0 0
        %1229 = vmatpush.bf16.msra.mxu0 0
        %1230 = vmatpush.bf16.msra.mxu0 %v1221
        %1231 = vmatmul.bf16.gmra.mxu0 %v1218
        %v1232 = vpop.f32.mrf.mxu0
        %v1233 = vadd.f32 0.0, %v1232
        %v1234 = vpop.f32.mrf.mxu0
        %1235 = vdwg.mxu0
        %1236 = vrot.lane.b32.xlu0 %v801, 40
        %v1237 = vpop.permute.xlu0 %1236
        %v1239 = vsel %vm779, %v1214, 0
        %v1242 = vsel %vm852, %v1237, 0
        %1244 = vmatpush.bf16.msra.mxu0 0
        %1245 = vmatpush.bf16.msra.mxu0 0
        %1246 = vmatpush.bf16.msra.mxu0 0
        %1247 = vmatpush.bf16.msra.mxu0 0
        %1248 = vmatpush.bf16.msra.mxu0 0
        %1249 = vmatpush.bf16.msra.mxu0 0
        %1250 = vmatpush.bf16.msra.mxu0 0
        %1251 = vmatpush.bf16.msra.mxu0 %v1242
        %1252 = vmatmul.bf16.gmra.mxu0 %v1239
        %v1253 = vpop.f32.mrf.mxu0
        %v1254 = vadd.f32 0.0, %v1253
        %v1255 = vpop.f32.mrf.mxu0
        %1256 = vdwg.mxu0
        %v1257 = vpack.c.bf16 %v1233, %v1233
        %v1258 = vpack.c.bf16 %v1254, %v1254
        %1261 = vrot.lane.b32.xlu0 %v1257, 24
        %v1262 = vpop.permute.xlu0 %1261
        %1263 = vrot.lane.b32.xlu0 %v1258, 24
        %v1264 = vpop.permute.xlu0 %1263
        %vm1267 = vcmask 257216
        %1268 = vst.msk [vmem:[#allocation3] sm:$0xf] %vm1267, %v1262
        %1269 = vst.msk [vmem:[#allocation3 + $0x4] sm:$0xf] %vm1267, %v1264
        %v1270 = vld [vmem:[#allocation3] sm:$0xf]
        %v1271 = vld [vmem:[#allocation3 + $0x4] sm:$0xf]
        %v1272 = vld [vmem:[%s638] sm:$0xf]
        %v1273 = vld [vmem:[%s638 + $0x4] sm:$0xf]
        %v1274 = vld [vmem:[%s638 + $0x8] sm:$0xf]
        %v1275 = vld [vmem:[%s638 + $0xc] sm:$0xf]
        %v1276 = vld [vmem:[%s641] sm:$0x1]
        %v1278 = vperm.slane %v1276, 0
        %v1282 = vunpack.c.l.b16 %v1270
        %v1283 = vunpack.c.l.b16 %v1271
        %v1284 = vpack.c.b16 %v1283, %v1282
        %v1289 = vunpack.c.l.b16 %v1272
        %v1290 = vunpack.c.l.b16 %v1273
        %v1291 = vunpack.c.l.b16 %v1274
        %v1292 = vunpack.c.l.b16 %v1275
        %v1293 = vpack.c.b16 %v1290, %v1289
        %v1294 = vpack.c.b16 %v1292, %v1291
        %v1298 = vsel %vm676, %v1284, 0
        %1300 = vmatpush.bf16.msra.mxu0 0
        %1301 = vmatpush.bf16.msra.mxu0 0
        %1302 = vmatpush.bf16.msra.mxu0 0
        %1303 = vmatpush.bf16.msra.mxu0 0
        %1304 = vmatpush.bf16.msra.mxu0 0
        %1305 = vmatpush.bf16.msra.mxu0 0
        %1306 = vmatpush.bf16.msra.mxu0 %v1294
        %1307 = vmatpush.bf16.msra.mxu0 %v1293
        %1308 = vmatmul.bf16.gmra.mxu0 %v1298
        %v1309 = vpop.f32.mrf.mxu0
        %v1310 = vadd.f32 %v1278, %v1309
        %v1311 = vpop.f32.mrf.mxu0
        %v1312 = vadd.f32 %v1278, %v1311
        %1313 = vdwg.mxu0
        %v1314 = vadd.f32 %v672, %v1310
        %v1315 = vadd.f32 %v673, %v1312
        %v1316 = vld [vmem:[%s644] sm:$0x1]
        %v1317 = vld [vmem:[%s552] sm:$0x1]
        %v1318 = vsel %vm676, %v1314, 0.0
        %1319 = vadd.xlane.f32.xlu0 %v1318
        %v1320 = vpop.xlane.xlu0 %1319
        %v1321 = vsel %vm676, %v1315, 0.0
        %1322 = vadd.xlane.f32.xlu0 %v1321
        %v1323 = vpop.xlane.xlu0 %1322
        %v1324 = vmul.f32 %v1320, %v689
        %v1325 = vmul.f32 %v1323, %v689
        %v1326 = vsub.f32 %v1314, %v1324
        %v1327 = vsub.f32 %v1315, %v1325
        %v1328 = vmul.f32 %v1326, %v1326
        %v1329 = vmul.f32 %v1327, %v1327
        %v1330 = vsel %vm676, %v1328, 0.0
        %1331 = vadd.xlane.f32.xlu0 %v1330
        %v1332 = vpop.xlane.xlu0 %1331
        %v1333 = vsel %vm676, %v1329, 0.0
        %1334 = vadd.xlane.f32.xlu0 %v1333
        %v1335 = vpop.xlane.xlu0 %1334
        %v1336 = vmul.f32 %v1332, %v689
        %v1337 = vmul.f32 %v1335, %v689
        %v1338 = vadd.f32 %v1336, 1e-05
        %v1339 = vadd.f32 %v1337, 1e-05
        %v1340 = vrsqrt.pop %v1338
        %v1341 = vmul.f32 %v1340, %v1338
        %v1342 = vmul.f32 %v1341, %v1340
        %v1343 = vmul.f32 0.5, %v1342
        %v1344 = vsub.f32 1.5, %v1343
        %v1345 = vmul.f32 %v1340, %v1344
        %vm1346 = vweird.f32 %v1338
        %vm1347 = vweird.f32 %v1340
        %vm1348 = vmor %vm1346, %vm1347
        %v1349 = vsel %vm1348, %v1340, %v1345
        %v1350 = vrsqrt.pop %v1339
        %v1351 = vmul.f32 %v1350, %v1339
        %v1352 = vmul.f32 %v1351, %v1350
        %v1353 = vmul.f32 0.5, %v1352
        %v1354 = vsub.f32 1.5, %v1353
        %v1355 = vmul.f32 %v1350, %v1354
        %vm1356 = vweird.f32 %v1339
        %vm1357 = vweird.f32 %v1350
        %vm1358 = vmor %vm1356, %vm1357
        %v1359 = vsel %vm1358, %v1350, %v1355
        %v1360 = vmul.f32 %v1326, %v1349
        %v1361 = vmul.f32 %v1327, %v1359
        %v1363 = vperm.slane %v1316, 0
        %v1365 = vmul.f32 %v1360, %v1363
        %v1366 = vmul.f32 %v1361, %v1363
        %v1368 = vperm.slane %v1317, 0
        %v1370 = vadd.f32 %v1365, %v1368
        %v1371 = vadd.f32 %v1366, %v1368
        %v1372 = vpack.c.bf16 %v1371, %v1370
        %v1373 = vld [vmem:[%s649] sm:$0xf]
        %v1374 = vld [vmem:[%s649 + $0x4] sm:$0xf]
        %v1375 = vld [vmem:[%s649 + $0x8] sm:$0xf]
        %v1376 = vld [vmem:[%s649 + $0xc] sm:$0xf]
        %v1377 = vld [vmem:[%s652] sm:$0x1]
        %v1379 = vperm.slane %v1377, 0
        %v1385 = vunpack.c.l.b16 %v1373
        %v1386 = vunpack.c.l.b16 %v1374
        %v1387 = vunpack.c.l.b16 %v1375
        %v1388 = vunpack.c.l.b16 %v1376
        %v1389 = vpack.c.b16 %v1386, %v1385
        %v1390 = vpack.c.b16 %v1388, %v1387
        %v1394 = vsel %vm676, %v1372, 0
        %1396 = vmatpush.bf16.msra.mxu0 0
        %1397 = vmatpush.bf16.msra.mxu0 0
        %1398 = vmatpush.bf16.msra.mxu0 0
        %1399 = vmatpush.bf16.msra.mxu0 0
        %1400 = vmatpush.bf16.msra.mxu0 0
        %1401 = vmatpush.bf16.msra.mxu0 0
        %1402 = vmatpush.bf16.msra.mxu0 %v1390
        %1403 = vmatpush.bf16.msra.mxu0 %v1389
        %1404 = vmatmul.bf16.gmra.mxu0 %v1394
        %v1405 = vpop.f32.mrf.mxu0
        %v1406 = vadd.f32 %v1379, %v1405
        %v1407 = vpop.f32.mrf.mxu0
        %v1408 = vadd.f32 %v1379, %v1407
        %1409 = vdwg.mxu0
        %v1410 = vmul.f32 %v1406, 0.5
        %v1411 = vmul.f32 %v1408, 0.5
        %v1412 = vmul.f32 %v1406, 0.70710677
        %v1413 = vmul.f32 %v1408, 0.70710677
        %v1414 = vmul.f32 %v1412, %v1412
        %v1415 = vmin.f32 16.0, %v1414
        %v1416 = vmul.f32 %v1415, 2.1237322e-06
        %v1417 = vadd.f32 %v1416, 0.00028619796
        %v1418 = vmul.f32 %v1415, %v1417
        %v1419 = vadd.f32 %v1418, 0.0036580483
        %v1420 = vmul.f32 %v1415, %v1419
        %v1421 = vadd.f32 %v1420, 0.05243302
        %v1422 = vmul.f32 %v1415, %v1421
        %v1423 = vadd.f32 %v1422, 0.18741608
        %v1424 = vmul.f32 %v1415, %v1423
        %v1425 = vadd.f32 %v1424, 1.1283791
        %v1426 = vmul.f32 %v1412, %v1425
        %v1427 = vmul.f32 %v1415, 3.8918573e-05
        %v1428 = vadd.f32 %v1427, 0.001143296
        %v1429 = vmul.f32 %v1415, %v1428
        %v1430 = vadd.f32 %v1429, 0.014752088
        %v1431 = vmul.f32 %v1415, %v1430
        %v1432 = vadd.f32 %v1431, 0.112945676
        %v1433 = vmul.f32 %v1415, %v1432
        %v1434 = vadd.f32 %v1433, 0.4994258
        %v1435 = vmul.f32 %v1415, %v1434
        %v1436 = vadd.f32 %v1435, 1.0
        %v1437 = vrcp.pop %v1436
        %v1438 = vmul.f32 %v1436, %v1437
        %v1439 = vsub.f32 1.0, %v1438
        %v1440 = vmul.f32 %v1437, %v1439
        %v1441 = vadd.f32 %v1437, %v1440
        %vm1442 = vweird.f32 %v1436
        %vm1443 = vweird.f32 %v1437
        %vm1444 = vmor %vm1442, %vm1443
        %v1445 = vsel %vm1444, %v1437, %v1441
        %v1446 = vand.u32 2147483647, %v1436
        %vm1447 = vcmp.eq.f32.partialorder %v1446, 8.507059e+37
        %v1448 = vand.u32 %v1436, 2147483648
        %v1449 = vor.u32 1.1754944e-38, %v1448
        %v1450 = vsel %vm1447, %v1449, %v1445
        %v1451 = vmul.f32 %v1426, %v1450
        %v1452 = vmin.f32 %v1451, 1.0
        %v1453 = vmax.f32 %v1452, -1.0
        %v1454 = vmul.f32 %v1413, %v1413
        %v1455 = vmin.f32 16.0, %v1454
        %v1456 = vmul.f32 %v1455, 2.1237322e-06
        %v1457 = vadd.f32 %v1456, 0.00028619796
        %v1458 = vmul.f32 %v1455, %v1457
        %v1459 = vadd.f32 %v1458, 0.0036580483
        %v1460 = vmul.f32 %v1455, %v1459
        %v1461 = vadd.f32 %v1460, 0.05243302
        %v1462 = vmul.f32 %v1455, %v1461
        %v1463 = vadd.f32 %v1462, 0.18741608
        %v1464 = vmul.f32 %v1455, %v1463
        %v1465 = vadd.f32 %v1464, 1.1283791
        %v1466 = vmul.f32 %v1413, %v1465
        %v1467 = vmul.f32 %v1455, 3.8918573e-05
        %v1468 = vadd.f32 %v1467, 0.001143296
        %v1469 = vmul.f32 %v1455, %v1468
        %v1470 = vadd.f32 %v1469, 0.014752088
        %v1471 = vmul.f32 %v1455, %v1470
        %v1472 = vadd.f32 %v1471, 0.112945676
        %v1473 = vmul.f32 %v1455, %v1472
        %v1474 = vadd.f32 %v1473, 0.4994258
        %v1475 = vmul.f32 %v1455, %v1474
        %v1476 = vadd.f32 %v1475, 1.0
        %v1477 = vrcp.pop %v1476
        %v1478 = vmul.f32 %v1476, %v1477
        %v1479 = vsub.f32 1.0, %v1478
        %v1480 = vmul.f32 %v1477, %v1479
        %v1481 = vadd.f32 %v1477, %v1480
        %vm1482 = vweird.f32 %v1476
        %vm1483 = vweird.f32 %v1477
        %vm1484 = vmor %vm1482, %vm1483
        %v1485 = vsel %vm1484, %v1477, %v1481
        %v1486 = vand.u32 2147483647, %v1476
        %vm1487 = vcmp.eq.f32.partialorder %v1486, 8.507059e+37
        %v1488 = vand.u32 %v1476, 2147483648
        %v1489 = vor.u32 1.1754944e-38, %v1488
        %v1490 = vsel %vm1487, %v1489, %v1485
        %v1491 = vmul.f32 %v1466, %v1490
        %v1492 = vmin.f32 %v1491, 1.0
        %v1493 = vmax.f32 %v1492, -1.0
        %v1494 = vadd.f32 %v1453, 1.0
        %v1495 = vadd.f32 %v1493, 1.0
        %v1496 = vmul.f32 %v1410, %v1494
        %v1497 = vmul.f32 %v1411, %v1495
        %v1498 = vpack.c.bf16 %v1497, %v1496
        %v1499 = vld [vmem:[%s657] sm:$0xf]
        %v1500 = vld [vmem:[%s657 + $0x4] sm:$0xf]
        %v1501 = vld [vmem:[%s657 + $0x8] sm:$0xf]
        %v1502 = vld [vmem:[%s657 + $0xc] sm:$0xf]
        %v1503 = vld [vmem:[%s657 + $0x10] sm:$0xf]
        %v1504 = vld [vmem:[%s657 + $0x14] sm:$0xf]
        %v1505 = vld [vmem:[%s657 + $0x18] sm:$0xf]
        %v1506 = vld [vmem:[%s657 + $0x1c] sm:$0xf]
        %v1507 = vld [vmem:[%s660] sm:$0x1]
        %v1509 = vperm.slane %v1507, 0
        %v1519 = vunpack.c.l.b16 %v1499
        %v1520 = vunpack.c.l.b16 %v1500
        %v1521 = vunpack.c.l.b16 %v1501
        %v1522 = vunpack.c.l.b16 %v1502
        %v1523 = vunpack.c.l.b16 %v1503
        %v1524 = vunpack.c.l.b16 %v1504
        %v1525 = vunpack.c.l.b16 %v1505
        %v1526 = vunpack.c.l.b16 %v1506
        %v1527 = vpack.c.b16 %v1520, %v1519
        %v1528 = vpack.c.b16 %v1522, %v1521
        %v1529 = vpack.c.b16 %v1524, %v1523
        %v1530 = vpack.c.b16 %v1526, %v1525
        %vm1535 = vcmask 523264
        %v1537 = vsel %vm1535, %v1498, 0
        %1539 = vmatpush.bf16.msra.mxu0 0
        %1540 = vmatpush.bf16.msra.mxu0 0
        %1541 = vmatpush.bf16.msra.mxu0 0
        %1542 = vmatpush.bf16.msra.mxu0 0
        %1543 = vmatpush.bf16.msra.mxu0 %v1530
        %1544 = vmatpush.bf16.msra.mxu0 %v1529
        %1545 = vmatpush.bf16.msra.mxu0 %v1528
        %1546 = vmatpush.bf16.msra.mxu0 %v1527
        %1547 = vmatmul.bf16.gmra.mxu0 %v1537
        %v1548 = vpop.f32.mrf.mxu0
        %v1549 = vadd.f32 %v1509, %v1548
        %v1550 = vpop.f32.mrf.mxu0
        %v1551 = vadd.f32 %v1509, %v1550
        %1552 = vdwg.mxu0
        %v1553 = vadd.f32 %v1314, %v1549
        %v1554 = vadd.f32 %v1315, %v1551
        %1555 = vst.msk [vmem:[#allocation2] sm:$0xff] %vm676, %v1553
        %1556 = vst.msk [vmem:[#allocation2 + $0x8] sm:$0xff] %vm676, %v1554
        %p1557 = scmp.eq.s32.totalorder %s36, 1
        // Predicated region
        $region89: #{tpu_custom_call.1} parent=67 // pred_check
          %p1558 = pneg %p1557
        $region90: #{tpu_custom_call.1} parent=67 // pred_check_branch
          %1560 = sbr.rel (%p1558) target = $region92
        $region91: #{tpu_custom_call.1} parent=67 // pred_region
          %1561 = vst.msk [vmem:[#allocation12] sm:$0xff] %vm676, %v1553
          %1562 = vst.msk [vmem:[#allocation12 + $0x8] sm:$0xff] %vm676, %v1554
        $region92: #{tpu_custom_call.1} parent=67 // pred_fallthru
          _
        // Predicated region
        $region93: #{tpu_custom_call.1} parent=67 // pred_check
          %p1563 = pneg %p373
        $region94: #{tpu_custom_call.1} parent=67 // pred_check_branch
          %1565 = sbr.rel (%p1563) target = $region96
        $region95: #{tpu_custom_call.1} parent=67 // pred_region
          %s1566 = smul.u32 2, %s35
          %1568 = vsyncadd [#allocation6], 0
          %s1569 = smul.addr %s1566, 8
          %s1570 = scalar_lea.hbm %s12, %s1569
          %s1571 = sshll.u32 [#allocation12], 4
          %s1572 = int_to_ptr.vmem [resolvable:$true] %s1571
          %s1573 = sshll.u32 %s1570, 4
          %s1574 = int_to_ptr.hbm [resolvable:$true] %s1573
          %1579 = dma.vmem_to_hbm [thread:$0]  %s1572, 256, %s1574, [#allocation6], 128, 128, 8
        $region96: #{tpu_custom_call.1} parent=67 // pred_fallthru
          _
        // Predicated region
        $region97: #{tpu_custom_call.1} parent=67 // pred_check
          %p1580 = pneg %p373
        $region98: #{tpu_custom_call.1} parent=67 // pred_check_branch
          %1582 = sbr.rel (%p1580) target = $region100
        $region99: #{tpu_custom_call.1} parent=67 // pred_region
          %1584 = dma.done [#allocation6], 256
        $region100: #{tpu_custom_call.1} parent=67 // pred_fallthru
          _
      $region68: #{tpu_custom_call.1} parent=5 // pred_fallthru
        _
      %p1585 = scmp.le.s32.totalorder 2, %s26
      // Predicated region
      $region101: #{tpu_custom_call.1} parent=5 // pred_check
        %p1586 = pneg %p1585
      $region102: #{tpu_custom_call.1} parent=5 // pred_check_branch
        %1588 = sbr.rel (%p1586) target = $region104
      $region103: #{tpu_custom_call.1} parent=5 // pred_region
        %s1589 = ssub.s32 %s26, 2
      $region104: #{tpu_custom_call.1} parent=5 // pred_fallthru
        _
    $region6: #{tpu_custom_call.1} parent=1 // loop_footer
      %s30 = sadd.s32 1, %s26
    $region7: #{tpu_custom_call.1} parent=1 // loop_footer_branch
      %25 = sbr.rel target = $region3
    $region8: #{tpu_custom_call.1} parent=1 // loop_exit
      _
    %1590 = vsyncpa [#allocation5], 1
    %s1591 = scalar_lea.sflag [#allocation5], 1
    %1592 = vsyncpa %s1591, 1
    %1593 = vsyncpa [#allocation8], 1
    %s1594 = scalar_lea.sflag [#allocation8], 1
    %1595 = vsyncpa %s1594, 1
    %1596 = vsyncpa [#allocation11], 1
    %s1597 = scalar_lea.sflag [#allocation11], 1
    %1598 = vsyncpa %s1597, 1
    %1599 = vsyncpa [#allocation6], 1
    %s1600 = scalar_lea.sflag [#allocation6], 1
    %1601 = vsyncpa %s1600, 1

</llo_original>
